<compile_context>
chip_gen: v7x
topology: tpu7x:2x2x1
jax: 0.10.0
libtpu: 0.0.40
codegen_flags: <defaults>
</compile_context>

<pallas_src>
import numpy as np
import jax
import jax.numpy as jnp
from jax import lax
from jax.experimental import pallas as pl
from jax.experimental.pallas import tpu as pltpu

INPUT_SIZE = 6            # L
C1, C2, C3 = 32, 64, 128  # conv channels
F1, F2 = 256, 64          # fc hidden sizes
F2_PAD = 128              # fc2 output padded to a full lane group
K = 3                     # conv kernel size (padding=1)
BN_EPS = 1e-5
OUT_PAD = 128             # lane-dense padded width of the final 1-unit layer
MAX_TILE_B = 2048         # keeps bf16 activations + weights << 32 MiB scoped VMEM (v7x safe)


def _round_up(x, m):
    return (x + m - 1) // m * m


# --------------------------------- kernel ---------------------------------

def _predictor_kernel(x_ref,
                      w1_ref, w2_ref, w3_ref,
                      fw1_ref, fw2_ref, fw3_ref,
                      out_ref):
    # All dots: bf16 operands, f32 MXU accumulation, ReLU in f32, bf16 for next layer.
    # conv1 + ReLU + BN(scale folded):  (tb, 6) @ (6, 192)
    h = jnp.dot(x_ref[...], w1_ref[...], preferred_element_type=jnp.float32)
    h = jnp.maximum(h, 0.0).astype(jnp.bfloat16)
    # conv2 + ReLU + BN:                (tb, 192) @ (192, 384)
    h = jnp.dot(h, w2_ref[...], preferred_element_type=jnp.float32)
    h = jnp.maximum(h, 0.0).astype(jnp.bfloat16)
    # conv3 + ReLU + BN:                (tb, 384) @ (384, 768)  -> already "flattened"
    h = jnp.dot(h, w3_ref[...], preferred_element_type=jnp.float32)
    h = jnp.maximum(h, 0.0).astype(jnp.bfloat16)
    # fc1 + ReLU                        (tb, 768) @ (768, 256)
    z = jnp.dot(h, fw1_ref[...], preferred_element_type=jnp.float32)
    z = jnp.maximum(z, 0.0).astype(jnp.bfloat16)
    # TODO(synk): Dropout(p=0.3 / p=0.2) omitted — eval-mode (identity) semantics.
    # fc2 + ReLU (output padded 64 -> 128 lanes, padding stays exactly zero)
    z = jnp.dot(z, fw2_ref[...], preferred_element_type=jnp.float32)
    z = jnp.maximum(z, 0.0).astype(jnp.bfloat16)
    # fc3 (padded 128 -> 128 lanes; unmasked, lane-dense f32 store)
    out_ref[...] = jnp.dot(z, fw3_ref[...], preferred_element_type=jnp.float32)


def spike_update_predictor(x, kernel_params, tile_b=512):
    """x: (B, INPUT_SIZE) float32 -> (B, 1) float32."""
    B = x.shape[0]
    tile_b = int(min(max(tile_b, 8), MAX_TILE_B))

    # Grid first, tile second: n steps, then the smallest sublane-aligned tile
    # covering B, so pad waste is < 8 rows (plus grid-evening), not a full tile.
    n = pl.cdiv(B, tile_b)
    if n >= 2 and n % 2 == 1:
        n += 1                      # v7x: even step count keeps both TensorCores busy
    tb = _round_up(pl.cdiv(B, n), 8)
    Bp = n * tb
    if Bp != B:
        x = jnp.pad(x, ((0, Bp - B), (0, 0)))
    x = x.astype(jnp.bfloat16)

    # Weights: full-shape blocks pinned at block (0,0) -> DMA'd once and VMEM-resident
    # across all batch-grid steps.  (Default double-buffering costs ~1.2 MB bf16 extra;
    # negligible, so pipeline_mode is left at its default.)
    weight_specs = [pl.BlockSpec(p.shape, lambda i: (0, 0)) for p in kernel_params]

    out = pl.pallas_call(
        _predictor_kernel,
        out_shape=jax.ShapeDtypeStruct((Bp, OUT_PAD), jnp.float32),
        grid=(n,),
        in_specs=[pl.BlockSpec((tb, INPUT_SIZE), lambda i: (i, 0))] + weight_specs,
        out_specs=pl.BlockSpec((tb, OUT_PAD), lambda i: (i, 0)),
        compiler_params=pltpu.CompilerParams(
            dimension_semantics=("parallel",)),
    )(x, *kernel_params)
    return out[:B, :1]


# ---------------- parameter construction (plain-JAX glue) ----------------

def init_pt_params(key):
    """Deterministic parameters matching the PyTorch module's _initialize_weights."""
    ks = jax.random.split(key, 6)

    def kaiming_fan_out(k, shape):          # Conv1d weight (Cout, Cin, K)
        fan_out = shape[0] * shape[2]
        return jax.random.normal(k, shape, jnp.float32) * jnp.sqrt(2.0 / fan_out)

    return dict(
        conv1_w=kaiming_fan_out(ks[0], (C1, 1, K)),
        conv2_w=kaiming_fan_out(ks[1], (C2, C1, K)),
        conv3_w=kaiming_fan_out(ks[2], (C3, C2, K)),
        fc1_w=jax.random.normal(ks[3], (F1, C3 * INPUT_SIZE), jnp.float32) * 0.01,
        fc2_w=jax.random.normal(ks[4], (F2, F1), jnp.float32) * 0.01,
        fc3_w=jax.random.normal(ks[5], (1, F2), jnp.float32) * 0.01,
    )  # all conv/linear/BN biases are zero; BN gamma=1, running stats (0, 1)


def _conv_to_toeplitz(w, L):
    """(Cout, Cin, K) conv weight -> (L*Cin, L*Cout) block-Toeplitz matrix.

    Row index  = src_l*Cin + ci   (flattened input,  layout l*Cin + ci)
    Col index  = l*Cout + co      (flattened output, layout l*Cout + co)

    Note: ~50% structural zeros with K=3, L=6 (an im2col (B*L, Cin*K) form would
    halve the FLOPs of conv2/conv3 but shrinks N below the MXU width on v6e/v7x;
    kept as Toeplitz for simplicity — the kernel is already tiny).
    """
    w = np.asarray(w)
    cout, cin, k = w.shape
    wt = np.transpose(w, (2, 1, 0))                      # (K, Cin, Cout)
    T = np.zeros((L * cin, L * cout), np.float32)
    for l in range(L):
        for kk in range(k):
            src = l + kk - 1                              # padding = 1
            if 0 <= src < L:
                T[src * cin:(src + 1) * cin, l * cout:(l + 1) * cout] = wt[kk]
    return T


def pack_kernel_params(pt):
    # Eval-mode BN with init stats: y = (x - 0)/sqrt(1+eps) * 1 + 0  ->  scale only.
    # ReLU(z)*s == ReLU(z*s) for s > 0, so fold the scale into the conv weights.
    bn_scale = np.float32(1.0 / np.sqrt(1.0 + BN_EPS))

    w1 = _conv_to_toeplitz(pt['conv1_w'], INPUT_SIZE) * bn_scale    # (6, 192)
    w2 = _conv_to_toeplitz(pt['conv2_w'], INPUT_SIZE) * bn_scale    # (192, 384)
    w3 = _conv_to_toeplitz(pt['conv3_w'], INPUT_SIZE) * bn_scale    # (384, 768)

    # FC1: PyTorch flatten index is c*L + l, kernel flatten index is l*C3 + c.
    fw1 = np.transpose(np.asarray(pt['fc1_w']).reshape(F1, C3, INPUT_SIZE),
                       (2, 1, 0)).reshape(C3 * INPUT_SIZE, F1)      # (768, 256)
    # FC2 / FC3 padded to full 128-lane groups (zero padding -> exact results).
    fw2 = np.zeros((F1, F2_PAD), np.float32)
    fw2[:, :F2] = np.asarray(pt['fc2_w']).T                         # (256, 128)
    fw3 = np.zeros((F2_PAD, OUT_PAD), np.float32)
    fw3[:F2, 0] = np.asarray(pt['fc3_w'])[0]                        # (128, 128)

    return tuple(jnp.asarray(a, dtype=jnp.bfloat16)
                 for a in (w1, w2, w3, fw1, fw2, fw3))


def reference_forward(x, pt):
    """Pure-JAX f32 (NCW, PyTorch-convention) reference for validation."""
    bn_scale = np.float32(1.0 / np.sqrt(1.0 + BN_EPS))
    h = x[:, None, :]                                               # (B, 1, L)
    for w in (pt['conv1_w'], pt['conv2_w'], pt['conv3_w']):
        h = lax.conv_general_dilated(h, w, window_strides=(1,), padding=((1, 1),),
                                     dimension_numbers=('NCH', 'OIH', 'NCH'))
        h = jnp.maximum(h, 0.0) * bn_scale                          # conv bias=0, BN beta=0
    flat = h.reshape(h.shape[0], -1)                                # (B, C3*L), idx = c*L + l
    z = jnp.maximum(flat @ pt['fc1_w'].T, 0.0)
    z = jnp.maximum(z @ pt['fc2_w'].T, 0.0)
    return z @ pt['fc3_w'].T


if __name__ == "__main__":
    key = jax.random.PRNGKey(0)
    k_params, k_x1, k_x2 = jax.random.split(key, 3)

    pt_params = init_pt_params(k_params)
    kernel_params = pack_kernel_params(pt_params)

    # bf16 operands vs f32 reference -> loosened tolerances (outputs are O(1e-4)).
    RTOL, ATOL = 0.1, 3e-5

    # Small-batch case (matches the module's typical tiny input).
    B = 2
    x = jax.random.normal(k_x1, (B, INPUT_SIZE), jnp.float32)
    out = jax.block_until_ready(spike_update_predictor(x, kernel_params))
    ref = reference_forward(x, pt_params)
    np.testing.assert_allclose(np.asarray(out), np.asarray(ref), rtol=RTOL, atol=ATOL)

    # Larger batch to exercise the multi-tile grid + padding + even-grid path.
    B2 = 300
    x2 = jax.random.normal(k_x2, (B2, INPUT_SIZE), jnp.float32)
    out2 = jax.block_until_ready(spike_update_predictor(x2, kernel_params, tile_b=128))
    ref2 = reference_forward(x2, pt_params)
    np.testing.assert_allclose(np.asarray(out2), np.asarray(ref2), rtol=RTOL, atol=ATOL)

    print("KERNEL_OK")
</pallas_src>

<mosaic_0001>
module attributes {stable_mosaic.version = 11 : i64} {
  func.func @_predictor_kernel(%arg0: i32, %arg1: memref<8x6xbf16, #tpu.memory_space<vmem>>, %arg2: memref<6x192xbf16, #tpu.memory_space<vmem>>, %arg3: memref<192x384xbf16, #tpu.memory_space<vmem>>, %arg4: memref<384x768xbf16, #tpu.memory_space<vmem>>, %arg5: memref<768x256xbf16, #tpu.memory_space<vmem>>, %arg6: memref<256x128xbf16, #tpu.memory_space<vmem>>, %arg7: memref<128x128xbf16, #tpu.memory_space<vmem>>, %arg8: memref<8x128xf32, #tpu.memory_space<vmem>>) attributes {dimension_semantics = [#tpu.dimension_semantics<parallel>], iteration_bounds = array<i64: 1>, scalar_prefetch = 0 : i64, scratch_operands = 0 : i64, tpu.core_type = #tpu.core_type<tc>, window_params = [{transform_indices = @transform_0, window_bounds = array<i64: 8, 6>}, {pipeline_mode = #tpu.pipeline_mode<synchronous>, transform_indices = @transform_1, window_bounds = array<i64: 6, 192>}, {pipeline_mode = #tpu.pipeline_mode<synchronous>, transform_indices = @transform_2, window_bounds = array<i64: 192, 384>}, {pipeline_mode = #tpu.pipeline_mode<synchronous>, transform_indices = @transform_3, window_bounds = array<i64: 384, 768>}, {pipeline_mode = #tpu.pipeline_mode<synchronous>, transform_indices = @transform_4, window_bounds = array<i64: 768, 256>}, {pipeline_mode = #tpu.pipeline_mode<synchronous>, transform_indices = @transform_5, window_bounds = array<i64: 256, 128>}, {pipeline_mode = #tpu.pipeline_mode<synchronous>, transform_indices = @transform_6, window_bounds = array<i64: 128, 128>}, {transform_indices = @transform_7, window_bounds = array<i64: 8, 128>}]} {
    %c0 = arith.constant 0 : index
    %c0_0 = arith.constant 0 : index
    %0 = vector.load %arg1[%c0, %c0_0] : memref<8x6xbf16, #tpu.memory_space<vmem>>, vector<8x6xbf16>
    %c0_1 = arith.constant 0 : index
    %c0_2 = arith.constant 0 : index
    %1 = vector.load %arg2[%c0_1, %c0_2] : memref<6x192xbf16, #tpu.memory_space<vmem>>, vector<6x192xbf16>
    %cst = arith.constant dense<0.000000e+00> : vector<8x192xf32>
    %2 = tpu.matmul %0, %1, %cst {dimension_numbers = #tpu.dot_dimension_numbers<[1], [0], [0], [1], [0, 0, 1, 1], [], []>} : vector<8x6xbf16>, vector<6x192xbf16>, vector<8x192xf32> -> vector<8x192xf32>
    %cst_3 = arith.constant 0.000000e+00 : f32
    %3 = vector.broadcast %cst_3 : f32 to vector<8x192xf32>
    %4 = arith.maximumf %2, %3 : vector<8x192xf32>
    %5 = arith.truncf %4 : vector<8x192xf32> to vector<8x192xbf16>
    %c0_4 = arith.constant 0 : index
    %c0_5 = arith.constant 0 : index
    %6 = vector.load %arg3[%c0_4, %c0_5] : memref<192x384xbf16, #tpu.memory_space<vmem>>, vector<192x384xbf16>
    %cst_6 = arith.constant dense<0.000000e+00> : vector<8x384xf32>
    %7 = tpu.matmul %5, %6, %cst_6 {dimension_numbers = #tpu.dot_dimension_numbers<[1], [0], [0], [1], [0, 0, 1, 1], [], []>} : vector<8x192xbf16>, vector<192x384xbf16>, vector<8x384xf32> -> vector<8x384xf32>
    %cst_7 = arith.constant 0.000000e+00 : f32
    %8 = vector.broadcast %cst_7 : f32 to vector<8x384xf32>
    %9 = arith.maximumf %7, %8 : vector<8x384xf32>
    %10 = arith.truncf %9 : vector<8x384xf32> to vector<8x384xbf16>
    %c0_8 = arith.constant 0 : index
    %c0_9 = arith.constant 0 : index
    %11 = vector.load %arg4[%c0_8, %c0_9] : memref<384x768xbf16, #tpu.memory_space<vmem>>, vector<384x768xbf16>
    %cst_10 = arith.constant dense<0.000000e+00> : vector<8x768xf32>
    %12 = tpu.matmul %10, %11, %cst_10 {dimension_numbers = #tpu.dot_dimension_numbers<[1], [0], [0], [1], [0, 0, 1, 1], [], []>} : vector<8x384xbf16>, vector<384x768xbf16>, vector<8x768xf32> -> vector<8x768xf32>
    %cst_11 = arith.constant 0.000000e+00 : f32
    %13 = vector.broadcast %cst_11 : f32 to vector<8x768xf32>
    %14 = arith.maximumf %12, %13 : vector<8x768xf32>
    %15 = arith.truncf %14 : vector<8x768xf32> to vector<8x768xbf16>
    %c0_12 = arith.constant 0 : index
    %c0_13 = arith.constant 0 : index
    %16 = vector.load %arg5[%c0_12, %c0_13] : memref<768x256xbf16, #tpu.memory_space<vmem>>, vector<768x256xbf16>
    %cst_14 = arith.constant dense<0.000000e+00> : vector<8x256xf32>
    %17 = tpu.matmul %15, %16, %cst_14 {dimension_numbers = #tpu.dot_dimension_numbers<[1], [0], [0], [1], [0, 0, 1, 1], [], []>} : vector<8x768xbf16>, vector<768x256xbf16>, vector<8x256xf32> -> vector<8x256xf32>
    %cst_15 = arith.constant 0.000000e+00 : f32
    %18 = vector.broadcast %cst_15 : f32 to vector<8x256xf32>
    %19 = arith.maximumf %17, %18 : vector<8x256xf32>
    %20 = arith.truncf %19 : vector<8x256xf32> to vector<8x256xbf16>
    %c0_16 = arith.constant 0 : index
    %c0_17 = arith.constant 0 : index
    %21 = vector.load %arg6[%c0_16, %c0_17] : memref<256x128xbf16, #tpu.memory_space<vmem>>, vector<256x128xbf16>
    %cst_18 = arith.constant dense<0.000000e+00> : vector<8x128xf32>
    %22 = tpu.matmul %20, %21, %cst_18 {dimension_numbers = #tpu.dot_dimension_numbers<[1], [0], [0], [1], [0, 0, 1, 1], [], []>} : vector<8x256xbf16>, vector<256x128xbf16>, vector<8x128xf32> -> vector<8x128xf32>
    %cst_19 = arith.constant 0.000000e+00 : f32
    %23 = vector.broadcast %cst_19 : f32 to vector<8x128xf32>
    %24 = arith.maximumf %22, %23 : vector<8x128xf32>
    %25 = arith.truncf %24 : vector<8x128xf32> to vector<8x128xbf16>
    %c0_20 = arith.constant 0 : index
    %c0_21 = arith.constant 0 : index
    %26 = vector.load %arg7[%c0_20, %c0_21] : memref<128x128xbf16, #tpu.memory_space<vmem>>, vector<128x128xbf16>
    %cst_22 = arith.constant dense<0.000000e+00> : vector<8x128xf32>
    %27 = tpu.matmul %25, %26, %cst_22 {dimension_numbers = #tpu.dot_dimension_numbers<[1], [0], [0], [1], [0, 0, 1, 1], [], []>} : vector<8x128xbf16>, vector<128x128xbf16>, vector<8x128xf32> -> vector<8x128xf32>
    %c0_23 = arith.constant 0 : index
    %c0_24 = arith.constant 0 : index
    %28 = vector.load %arg8[%c0_23, %c0_24] : memref<8x128xf32, #tpu.memory_space<vmem>>, vector<8x128xf32>
    tpu.vector_store %arg8[%c0_23, %c0_24], %27 {strides = array<i32>} : memref<8x128xf32, #tpu.memory_space<vmem>>, vector<8x128xf32>,
    return
  }
  func.func @transform_0(%arg0: i32) -> (i32, i32) {
    %c0_i32 = arith.constant 0 : i32
    %c0_i32_0 = arith.constant 0 : i32
    return %arg0, %c0_i32 : i32, i32
  }
  func.func @transform_1(%arg0: i32) -> (i32, i32) {
    %c0_i32 = arith.constant 0 : i32
    %c0_i32_0 = arith.constant 0 : i32
    %c0_i32_1 = arith.constant 0 : i32
    return %c0_i32, %c0_i32_0 : i32, i32
  }
  func.func @transform_2(%arg0: i32) -> (i32, i32) {
    %c0_i32 = arith.constant 0 : i32
    %c0_i32_0 = arith.constant 0 : i32
    %c0_i32_1 = arith.constant 0 : i32
    return %c0_i32, %c0_i32_0 : i32, i32
  }
  func.func @transform_3(%arg0: i32) -> (i32, i32) {
    %c0_i32 = arith.constant 0 : i32
    %c0_i32_0 = arith.constant 0 : i32
    %c0_i32_1 = arith.constant 0 : i32
    return %c0_i32, %c0_i32_0 : i32, i32
  }
  func.func @transform_4(%arg0: i32) -> (i32, i32) {
    %c0_i32 = arith.constant 0 : i32
    %c0_i32_0 = arith.constant 0 : i32
    %c0_i32_1 = arith.constant 0 : i32
    return %c0_i32, %c0_i32_0 : i32, i32
  }
  func.func @transform_5(%arg0: i32) -> (i32, i32) {
    %c0_i32 = arith.constant 0 : i32
    %c0_i32_0 = arith.constant 0 : i32
    %c0_i32_1 = arith.constant 0 : i32
    return %c0_i32, %c0_i32_0 : i32, i32
  }
  func.func @transform_6(%arg0: i32) -> (i32, i32) {
    %c0_i32 = arith.constant 0 : i32
    %c0_i32_0 = arith.constant 0 : i32
    %c0_i32_1 = arith.constant 0 : i32
    return %c0_i32, %c0_i32_0 : i32, i32
  }
  func.func @transform_7(%arg0: i32) -> (i32, i32) {
    %c0_i32 = arith.constant 0 : i32
    %c0_i32_0 = arith.constant 0 : i32
    return %arg0, %c0_i32 : i32, i32
  }
}

</mosaic_0001>

<llo_original>
// kernel: tpu_custom_call.1
$region0: #{tpu_custom_call.1}
  #allocation0 [shape = 'u32[]', space=smem, size = 0x4, offset = 0x4, fixed_abs, tag = 'smem constant byte address 0x4 - core index']
  #allocation1 [shape = 'u32[144,128]{1,0:T(1,128)}', space=vmem, size = 0x12000, scoped, tag = 'internal scratch']
  %s0 = inlined_call_operand.hbm [shape: bf16[8,6], index: 0, kind: input, shape index: {}]
  %s1 = inlined_call_operand.hbm [shape: bf16[6,192], index: 1, kind: input, shape index: {}]
  %s2 = inlined_call_operand.hbm [shape: bf16[192,384], index: 2, kind: input, shape index: {}]
  %s3 = inlined_call_operand.hbm [shape: bf16[384,768], index: 3, kind: input, shape index: {}]
  %s4 = inlined_call_operand.hbm [shape: bf16[768,256], index: 4, kind: input, shape index: {}]
  %s5 = inlined_call_operand.hbm [shape: bf16[256,128], index: 5, kind: input, shape index: {}]
  %s6 = inlined_call_operand.hbm [shape: bf16[128,128], index: 6, kind: input, shape index: {}]
  %s7 = inlined_call_operand.hbm [shape: f32[8,128], index: 7, kind: output, shape index: {}]
  %s8 = sld [smem:[#allocation0]]
  $region66: #{tpu_custom_call.1} parent=0
    _
  %s10 = ssub.s32 1, %s8
  %s11 = scalar_select 0, %s10, %s8
  $region1: #{tpu_custom_call.1} parent=0
    #allocation2 [shape = 'u8[2048]{0}', space=vmem, size = 0x800, scoped, tag = 'input window, operand 0, single buffered']
    #allocation3 [shape = 's32[1]{0}', space=sflag, size = 0x4, scoped, tag = 'scoped memory for tpu_custom_call.1']
    #allocation4 [shape = 's32[1]{0}', space=sflag, size = 0x4, scoped, tag = 'scoped memory for tpu_custom_call.1']
    #allocation5 [shape = 'u8[4096]{0}', space=vmem, size = 0x1000, scoped, tag = 'input window, operand 1, single buffered']
    #allocation6 [shape = 's32[1]{0}', space=sflag, size = 0x4, scoped, tag = 'scoped memory for tpu_custom_call.1']
    #allocation7 [shape = 'u8[147456]{0}', space=vmem, size = 0x24000, scoped, tag = 'input window, operand 2, single buffered']
    #allocation8 [shape = 'u8[589824]{0}', space=vmem, size = 0x90000, scoped, tag = 'input window, operand 3, single buffered']
    #allocation9 [shape = 's32[1]{0}', space=sflag, size = 0x4, scoped, tag = 'scoped memory for tpu_custom_call.1']
    #allocation10 [shape = 'u8[393216]{0}', space=vmem, size = 0x60000, scoped, tag = 'input window, operand 4, single buffered']
    #allocation11 [shape = 'u8[65536]{0}', space=vmem, size = 0x10000, scoped, tag = 'input window, operand 5, single buffered']
    #allocation12 [shape = 's32[1]{0}', space=sflag, size = 0x4, scoped, tag = 'scoped memory for tpu_custom_call.1']
    #allocation13 [shape = 'u8[32768]{0}', space=vmem, size = 0x8000, scoped, tag = 'input window, operand 6, single buffered']
    #allocation14 [shape = 'u8[4096]{0}', space=vmem, size = 0x1000, scoped, tag = 'output window, operand 0, single buffered']
    %12 = vsyncpa [#allocation3], 0
    %13 = vsyncpa [#allocation6], 0
    %14 = vsyncpa [#allocation9], 0
    %15 = vsyncpa [#allocation12], 0
    %16 = vsyncpa [#allocation4], 0
    // Predicated region
    $region2: #{tpu_custom_call.1} parent=1 // pred_check
      _
    $region3: #{tpu_custom_call.1} parent=1 // pred_check_branch
      %18 = sbr.rel (0) target = $region5
    $region4: #{tpu_custom_call.1} parent=1 // pred_region
      %s20 = ssub.s32 64, 64
      %21 = vsyncadd [#allocation3], %s20
      %s23 = sshll.u32 [#allocation2], 4
      %s24 = int_to_ptr.vmem [resolvable:$true] %s23
      %26 = dma.hbm_to_vmem [thread:$0]  %s0, 64, %s24, [#allocation3]
    $region5: #{tpu_custom_call.1} parent=1 // pred_fallthru
      _
    // Predicated region
    $region6: #{tpu_custom_call.1} parent=1 // pred_check
      _
    $region7: #{tpu_custom_call.1} parent=1 // pred_check_branch
      %28 = sbr.rel (0) target = $region9
    $region8: #{tpu_custom_call.1} parent=1 // pred_region
      %s30 = ssub.s32 128, 128
      %31 = vsyncadd [#allocation6], %s30
      %s33 = sshll.u32 [#allocation5], 4
      %s34 = int_to_ptr.vmem [resolvable:$true] %s33
      %36 = dma.hbm_to_vmem [thread:$0]  %s1, 128, %s34, [#allocation6]
    $region9: #{tpu_custom_call.1} parent=1 // pred_fallthru
      _
    // Predicated region
    $region10: #{tpu_custom_call.1} parent=1 // pred_check
      _
    $region11: #{tpu_custom_call.1} parent=1 // pred_check_branch
      %38 = sbr.rel (0) target = $region13
    $region12: #{tpu_custom_call.1} parent=1 // pred_region
      %s40 = ssub.s32 4608, 4608
      %41 = vsyncadd [#allocation6], %s40
      %s42 = sshll.u32 [#allocation7], 4
      %s43 = int_to_ptr.vmem [resolvable:$true] %s42
      %48 = dma.hbm_to_vmem [thread:$0]  %s2, 4608, %s43, [#allocation6], 192, 192, 12
    $region13: #{tpu_custom_call.1} parent=1 // pred_fallthru
      _
    // Predicated region
    $region14: #{tpu_custom_call.1} parent=1 // pred_check
      _
    $region15: #{tpu_custom_call.1} parent=1 // pred_check_branch
      %50 = sbr.rel (0) target = $region17
    $region16: #{tpu_custom_call.1} parent=1 // pred_region
      %s52 = ssub.s32 18432, 18432
      %53 = vsyncadd [#allocation9], %s52
      %s54 = sshll.u32 [#allocation8], 4
      %s55 = int_to_ptr.vmem [resolvable:$true] %s54
      %60 = dma.hbm_to_vmem [thread:$0]  %s3, 18432, %s55, [#allocation9], 384, 384, 24
    $region17: #{tpu_custom_call.1} parent=1 // pred_fallthru
      _
    // Predicated region
    $region18: #{tpu_custom_call.1} parent=1 // pred_check
      _
    $region19: #{tpu_custom_call.1} parent=1 // pred_check_branch
      %62 = sbr.rel (0) target = $region21
    $region20: #{tpu_custom_call.1} parent=1 // pred_region
      %s64 = ssub.s32 12288, 12288
      %65 = vsyncadd [#allocation9], %s64
      %s66 = sshll.u32 [#allocation10], 4
      %s67 = int_to_ptr.vmem [resolvable:$true] %s66
      %72 = dma.hbm_to_vmem [thread:$0]  %s4, 12288, %s67, [#allocation9], 128, 128, 8
    $region21: #{tpu_custom_call.1} parent=1 // pred_fallthru
      _
    // Predicated region
    $region22: #{tpu_custom_call.1} parent=1 // pred_check
      _
    $region23: #{tpu_custom_call.1} parent=1 // pred_check_branch
      %74 = sbr.rel (0) target = $region25
    $region24: #{tpu_custom_call.1} parent=1 // pred_region
      %s76 = ssub.s32 2048, 2048
      %77 = vsyncadd [#allocation12], %s76
      %s78 = sshll.u32 [#allocation11], 4
      %s79 = int_to_ptr.vmem [resolvable:$true] %s78
      %84 = dma.hbm_to_vmem [thread:$0]  %s5, 2048, %s79, [#allocation12], 64, 64, 4
    $region25: #{tpu_custom_call.1} parent=1 // pred_fallthru
      _
    // Predicated region
    $region26: #{tpu_custom_call.1} parent=1 // pred_check
      _
    $region27: #{tpu_custom_call.1} parent=1 // pred_check_branch
      %86 = sbr.rel (0) target = $region29
    $region28: #{tpu_custom_call.1} parent=1 // pred_region
      %s88 = ssub.s32 1024, 1024
      %89 = vsyncadd [#allocation12], %s88
      %s90 = sshll.u32 [#allocation13], 4
      %s91 = int_to_ptr.vmem [resolvable:$true] %s90
      %96 = dma.hbm_to_vmem [thread:$0]  %s6, 1024, %s91, [#allocation12], 64, 64, 4
    $region29: #{tpu_custom_call.1} parent=1 // pred_fallthru
      _
    // Predicated region
    $region30: #{tpu_custom_call.1} parent=1 // pred_check
      _
    $region31: #{tpu_custom_call.1} parent=1 // pred_check_branch
      %98 = sbr.rel (0) target = $region33
    $region32: #{tpu_custom_call.1} parent=1 // pred_region
      %99 = dma.done [#allocation3], 64
    $region33: #{tpu_custom_call.1} parent=1 // pred_fallthru
      _
    // Predicated region
    $region34: #{tpu_custom_call.1} parent=1 // pred_check
      _
    $region35: #{tpu_custom_call.1} parent=1 // pred_check_branch
      %101 = sbr.rel (0) target = $region37
    $region36: #{tpu_custom_call.1} parent=1 // pred_region
      %102 = dma.done [#allocation6], 128
    $region37: #{tpu_custom_call.1} parent=1 // pred_fallthru
      _
    // Predicated region
    $region38: #{tpu_custom_call.1} parent=1 // pred_check
      _
    $region39: #{tpu_custom_call.1} parent=1 // pred_check_branch
      %104 = sbr.rel (0) target = $region41
    $region40: #{tpu_custom_call.1} parent=1 // pred_region
      %105 = dma.done [#allocation6], 4608
    $region41: #{tpu_custom_call.1} parent=1 // pred_fallthru
      _
    // Predicated region
    $region42: #{tpu_custom_call.1} parent=1 // pred_check
      _
    $region43: #{tpu_custom_call.1} parent=1 // pred_check_branch
      %107 = sbr.rel (0) target = $region45
    $region44: #{tpu_custom_call.1} parent=1 // pred_region
      %108 = dma.done [#allocation9], 18432
    $region45: #{tpu_custom_call.1} parent=1 // pred_fallthru
      _
    // Predicated region
    $region46: #{tpu_custom_call.1} parent=1 // pred_check
      _
    $region47: #{tpu_custom_call.1} parent=1 // pred_check_branch
      %110 = sbr.rel (0) target = $region49
    $region48: #{tpu_custom_call.1} parent=1 // pred_region
      %111 = dma.done [#allocation9], 12288
    $region49: #{tpu_custom_call.1} parent=1 // pred_fallthru
      _
    // Predicated region
    $region50: #{tpu_custom_call.1} parent=1 // pred_check
      _
    $region51: #{tpu_custom_call.1} parent=1 // pred_check_branch
      %113 = sbr.rel (0) target = $region53
    $region52: #{tpu_custom_call.1} parent=1 // pred_region
      %114 = dma.done [#allocation12], 2048
    $region53: #{tpu_custom_call.1} parent=1 // pred_fallthru
      _
    // Predicated region
    $region54: #{tpu_custom_call.1} parent=1 // pred_check
      _
    $region55: #{tpu_custom_call.1} parent=1 // pred_check_branch
      %116 = sbr.rel (0) target = $region57
    $region56: #{tpu_custom_call.1} parent=1 // pred_region
      %117 = dma.done [#allocation12], 1024
    $region57: #{tpu_custom_call.1} parent=1 // pred_fallthru
      _
    %v119 = vld [vmem:[#allocation2] sm:$0xf]
    %v120 = vld [vmem:[#allocation5] sm:$0x77]
    %v122 = vunpack.c.l.b16 %v120
    %v123 = vunpack.c.h.b16 %v120
    %v124 = vpack.c.b16 %v122, %v122
    %v125 = vpack.c.b16 %v123, %v123
    %vm126 = vcmask 48128
    %v128 = vsel %vm126, %v119, 0
    %vm130 = vcmask 1042432
    %v132 = vsel %vm130, %v124, 0
    %v135 = vsel %vm130, %v125, 0
    %137 = vmatprep.subr.bf16.mxu0 %v135
    %138 = vmatpush1.bf16.msra.mxu0 %v132
    %139 = vmatprep.subr.bf16.mxu0 0
    %140 = vmatpush1.bf16.msra.mxu0 0
    %141 = vmatprep.subr.bf16.mxu0 0
    %142 = vmatpush1.bf16.msra.mxu0 0
    %143 = vmatprep.subr.bf16.mxu0 0
    %144 = vmatpush1.bf16.msra.mxu0 0
    %145 = vmatprep.subr.bf16.mxu0 0
    %146 = vmatpush1.bf16.msra.mxu0 0
    %147 = vmatprep.subr.bf16.mxu0 0
    %148 = vmatpush1.bf16.msra.mxu0 0
    %149 = vmatprep.subr.bf16.mxu0 0
    %150 = vmatpush1.bf16.msra.mxu0 0
    %151 = vmatprep.subr.bf16.mxu0 0
    %152 = vmatpush1.bf16.msra.mxu0 0
    %153 = vmatprep.subr.bf16.mxu0 0
    %154 = vmatpush1.bf16.msra.mxu0 0
    %155 = vmatprep.subr.bf16.mxu0 0
    %156 = vmatpush1.bf16.msra.mxu0 0
    %157 = vmatprep.subr.bf16.mxu0 0
    %158 = vmatpush1.bf16.msra.mxu0 0
    %159 = vmatprep.subr.bf16.mxu0 0
    %160 = vmatpush1.bf16.msra.mxu0 0
    %161 = vmatprep.subr.bf16.mxu0 0
    %162 = vmatpush1.bf16.msra.mxu0 0
    %163 = vmatprep.subr.bf16.mxu0 0
    %164 = vmatpush1.bf16.msra.mxu0 0
    %165 = vmatprep.subr.bf16.mxu0 0
    %166 = vmatpush1.bf16.msra.mxu0 0
    %167 = vmatprep.subr.bf16.mxu0 0
    %168 = vmatpush1.bf16.msra.mxu0 0
    %169 = vmatprep.mubr.bf16.mxu0 0
    %170 = vmatmul.mubr.bf16.gmra.mrb[0].mxu0 %v128
    %v171 = vpop.f32.mrb[0].mxu0
    %v172 = vadd.f32 0.0, %v171
    %v173 = vpop.f32.mrb[0].mxu0
    %v174 = vadd.f32 0.0, %v173
    %v175 = vpop.f32.mrb[0].mxu0
    %v176 = vpop.f32.mrb[0].mxu0
    %177 = vdwg.mxu0
    %v178 = vmax.f32 %v172, 0.0
    %v179 = vmax.f32 %v174, 0.0
    %v180 = vpack.c.bf16 %v178, %v178
    %v181 = vpack.c.bf16 %v179, %v179
    %v182 = vld [vmem:[#allocation7] sm:$0xff]
    %v183 = vld [vmem:[#allocation7 + $0x8] sm:$0xf]
    %v184 = vld [vmem:[#allocation7 + $0xc] sm:$0xff]
    %v185 = vld [vmem:[#allocation7 + $0x14] sm:$0xf]
    %v186 = vld [vmem:[#allocation7 + $0x18] sm:$0xff]
    %v187 = vld [vmem:[#allocation7 + $0x20] sm:$0xf]
    %v188 = vld [vmem:[#allocation7 + $0x24] sm:$0xff]
    %v189 = vld [vmem:[#allocation7 + $0x2c] sm:$0xf]
    %v190 = vld [vmem:[#allocation7 + $0x30] sm:$0xff]
    %v191 = vld [vmem:[#allocation7 + $0x38] sm:$0xf]
    %v192 = vld [vmem:[#allocation7 + $0x3c] sm:$0xff]
    %v193 = vld [vmem:[#allocation7 + $0x44] sm:$0xf]
    %v194 = vld [vmem:[#allocation7 + $0x48] sm:$0xff]
    %v195 = vld [vmem:[#allocation7 + $0x50] sm:$0xf]
    %v196 = vld [vmem:[#allocation7 + $0x54] sm:$0xff]
    %v197 = vld [vmem:[#allocation7 + $0x5c] sm:$0xf]
    %v198 = vld [vmem:[#allocation7 + $0x60] sm:$0xff]
    %v199 = vld [vmem:[#allocation7 + $0x68] sm:$0xf]
    %v200 = vld [vmem:[#allocation7 + $0x6c] sm:$0xff]
    %v201 = vld [vmem:[#allocation7 + $0x74] sm:$0xf]
    %v202 = vld [vmem:[#allocation7 + $0x78] sm:$0xff]
    %v203 = vld [vmem:[#allocation7 + $0x80] sm:$0xf]
    %v204 = vld [vmem:[#allocation7 + $0x84] sm:$0xff]
    %v205 = vld [vmem:[#allocation7 + $0x8c] sm:$0xf]
    %v206 = vld [vmem:[#allocation7 + $0x90] sm:$0xff]
    %v207 = vld [vmem:[#allocation7 + $0x98] sm:$0xf]
    %v208 = vld [vmem:[#allocation7 + $0x9c] sm:$0xff]
    %v209 = vld [vmem:[#allocation7 + $0xa4] sm:$0xf]
    %v210 = vld [vmem:[#allocation7 + $0xa8] sm:$0xff]
    %v211 = vld [vmem:[#allocation7 + $0xb0] sm:$0xf]
    %v212 = vld [vmem:[#allocation7 + $0xb4] sm:$0xff]
    %v213 = vld [vmem:[#allocation7 + $0xbc] sm:$0xf]
    %v214 = vld [vmem:[#allocation7 + $0xc0] sm:$0xff]
    %v215 = vld [vmem:[#allocation7 + $0xc8] sm:$0xf]
    %v216 = vld [vmem:[#allocation7 + $0xcc] sm:$0xff]
    %v217 = vld [vmem:[#allocation7 + $0xd4] sm:$0xf]
    %v218 = vld [vmem:[#allocation7 + $0xd8] sm:$0xff]
    %v219 = vld [vmem:[#allocation7 + $0xe0] sm:$0xf]
    %v220 = vld [vmem:[#allocation7 + $0xe4] sm:$0xff]
    %v221 = vld [vmem:[#allocation7 + $0xec] sm:$0xf]
    %v222 = vld [vmem:[#allocation7 + $0xf0] sm:$0xff]
    %v223 = vld [vmem:[#allocation7 + $0xf8] sm:$0xf]
    %v224 = vld [vmem:[#allocation7 + $0xfc] sm:$0xff]
    %v225 = vld [vmem:[#allocation7 + $0x104] sm:$0xf]
    %v226 = vld [vmem:[#allocation7 + $0x108] sm:$0xff]
    %v227 = vld [vmem:[#allocation7 + $0x110] sm:$0xf]
    %v228 = vld [vmem:[#allocation7 + $0x114] sm:$0xff]
    %v229 = vld [vmem:[#allocation7 + $0x11c] sm:$0xf]
    %v278 = vunpack.c.l.b16 %v182
    %v279 = vunpack.c.h.b16 %v182
    %v280 = vunpack.c.l.b16 %v183
    %v281 = vunpack.c.l.b16 %v184
    %v282 = vunpack.c.h.b16 %v184
    %v283 = vunpack.c.l.b16 %v185
    %v284 = vunpack.c.l.b16 %v186
    %v285 = vunpack.c.h.b16 %v186
    %v286 = vunpack.c.l.b16 %v187
    %v287 = vunpack.c.l.b16 %v188
    %v288 = vunpack.c.h.b16 %v188
    %v289 = vunpack.c.l.b16 %v189
    %v290 = vunpack.c.l.b16 %v190
    %v291 = vunpack.c.h.b16 %v190
    %v292 = vunpack.c.l.b16 %v191
    %v293 = vunpack.c.l.b16 %v192
    %v294 = vunpack.c.h.b16 %v192
    %v295 = vunpack.c.l.b16 %v193
    %v296 = vunpack.c.l.b16 %v194
    %v297 = vunpack.c.h.b16 %v194
    %v298 = vunpack.c.l.b16 %v195
    %v299 = vunpack.c.l.b16 %v196
    %v300 = vunpack.c.h.b16 %v196
    %v301 = vunpack.c.l.b16 %v197
    %v302 = vunpack.c.l.b16 %v198
    %v303 = vunpack.c.h.b16 %v198
    %v304 = vunpack.c.l.b16 %v199
    %v305 = vunpack.c.l.b16 %v200
    %v306 = vunpack.c.h.b16 %v200
    %v307 = vunpack.c.l.b16 %v201
    %v308 = vunpack.c.l.b16 %v202
    %v309 = vunpack.c.h.b16 %v202
    %v310 = vunpack.c.l.b16 %v203
    %v311 = vunpack.c.l.b16 %v204
    %v312 = vunpack.c.h.b16 %v204
    %v313 = vunpack.c.l.b16 %v205
    %v314 = vunpack.c.l.b16 %v206
    %v315 = vunpack.c.h.b16 %v206
    %v316 = vunpack.c.l.b16 %v207
    %v317 = vunpack.c.l.b16 %v208
    %v318 = vunpack.c.h.b16 %v208
    %v319 = vunpack.c.l.b16 %v209
    %v320 = vunpack.c.l.b16 %v210
    %v321 = vunpack.c.h.b16 %v210
    %v322 = vunpack.c.l.b16 %v211
    %v323 = vunpack.c.l.b16 %v212
    %v324 = vunpack.c.h.b16 %v212
    %v325 = vunpack.c.l.b16 %v213
    %v326 = vunpack.c.l.b16 %v214
    %v327 = vunpack.c.h.b16 %v214
    %v328 = vunpack.c.l.b16 %v215
    %v329 = vunpack.c.l.b16 %v216
    %v330 = vunpack.c.h.b16 %v216
    %v331 = vunpack.c.l.b16 %v217
    %v332 = vunpack.c.l.b16 %v218
    %v333 = vunpack.c.h.b16 %v218
    %v334 = vunpack.c.l.b16 %v219
    %v335 = vunpack.c.l.b16 %v220
    %v336 = vunpack.c.h.b16 %v220
    %v337 = vunpack.c.l.b16 %v221
    %v338 = vunpack.c.l.b16 %v222
    %v339 = vunpack.c.h.b16 %v222
    %v340 = vunpack.c.l.b16 %v223
    %v341 = vunpack.c.l.b16 %v224
    %v342 = vunpack.c.h.b16 %v224
    %v343 = vunpack.c.l.b16 %v225
    %v344 = vunpack.c.l.b16 %v226
    %v345 = vunpack.c.h.b16 %v226
    %v346 = vunpack.c.l.b16 %v227
    %v347 = vunpack.c.l.b16 %v228
    %v348 = vunpack.c.h.b16 %v228
    %v349 = vunpack.c.l.b16 %v229
    %v350 = vpack.c.b16 %v281, %v278
    %v351 = vpack.c.b16 %v282, %v279
    %v352 = vpack.c.b16 %v283, %v280
    %v353 = vpack.c.b16 %v287, %v284
    %v354 = vpack.c.b16 %v288, %v285
    %v355 = vpack.c.b16 %v289, %v286
    %v356 = vpack.c.b16 %v293, %v290
    %v357 = vpack.c.b16 %v294, %v291
    %v358 = vpack.c.b16 %v295, %v292
    %v359 = vpack.c.b16 %v299, %v296
    %v360 = vpack.c.b16 %v300, %v297
    %v361 = vpack.c.b16 %v301, %v298
    %v362 = vpack.c.b16 %v305, %v302
    %v363 = vpack.c.b16 %v306, %v303
    %v364 = vpack.c.b16 %v307, %v304
    %v365 = vpack.c.b16 %v311, %v308
    %v366 = vpack.c.b16 %v312, %v309
    %v367 = vpack.c.b16 %v313, %v310
    %v368 = vpack.c.b16 %v317, %v314
    %v369 = vpack.c.b16 %v318, %v315
    %v370 = vpack.c.b16 %v319, %v316
    %v371 = vpack.c.b16 %v323, %v320
    %v372 = vpack.c.b16 %v324, %v321
    %v373 = vpack.c.b16 %v325, %v322
    %v374 = vpack.c.b16 %v329, %v326
    %v375 = vpack.c.b16 %v330, %v327
    %v376 = vpack.c.b16 %v331, %v328
    %v377 = vpack.c.b16 %v335, %v332
    %v378 = vpack.c.b16 %v336, %v333
    %v379 = vpack.c.b16 %v337, %v334
    %v380 = vpack.c.b16 %v341, %v338
    %v381 = vpack.c.b16 %v342, %v339
    %v382 = vpack.c.b16 %v343, %v340
    %v383 = vpack.c.b16 %v347, %v344
    %v384 = vpack.c.b16 %v348, %v345
    %v385 = vpack.c.b16 %v349, %v346
    %vm422 = vcmask 523264
    %v424 = vsel %vm422, %v181, 0
    %426 = vmatprep.subr.bf16.mxu0 %v351
    %427 = vmatpush1.bf16.msra.mxu0 %v350
    %428 = vmatprep.subr.bf16.mxu0 %v354
    %429 = vmatpush1.bf16.msra.mxu0 %v353
    %430 = vmatprep.subr.bf16.mxu0 %v357
    %431 = vmatpush1.bf16.msra.mxu0 %v356
    %432 = vmatprep.subr.bf16.mxu0 %v360
    %433 = vmatpush1.bf16.msra.mxu0 %v359
    %434 = vmatprep.subr.bf16.mxu0 %v363
    %435 = vmatpush1.bf16.msra.mxu0 %v362
    %436 = vmatprep.subr.bf16.mxu0 %v366
    %437 = vmatpush1.bf16.msra.mxu0 %v365
    %438 = vmatprep.subr.bf16.mxu0 %v369
    %439 = vmatpush1.bf16.msra.mxu0 %v368
    %440 = vmatprep.subr.bf16.mxu0 %v372
    %441 = vmatpush1.bf16.msra.mxu0 %v371
    %442 = vmatprep.subr.bf16.mxu0 %v375
    %443 = vmatpush1.bf16.msra.mxu0 %v374
    %444 = vmatprep.subr.bf16.mxu0 %v378
    %445 = vmatpush1.bf16.msra.mxu0 %v377
    %446 = vmatprep.subr.bf16.mxu0 %v381
    %447 = vmatpush1.bf16.msra.mxu0 %v380
    %448 = vmatprep.subr.bf16.mxu0 %v384
    %449 = vmatpush1.bf16.msra.mxu0 %v383
    %450 = vmatprep.subr.bf16.mxu0 0
    %451 = vmatpush1.bf16.msra.mxu0 0
    %452 = vmatprep.subr.bf16.mxu0 0
    %453 = vmatpush1.bf16.msra.mxu0 0
    %454 = vmatprep.subr.bf16.mxu0 0
    %455 = vmatpush1.bf16.msra.mxu0 0
    %456 = vmatprep.subr.bf16.mxu0 0
    %457 = vmatpush1.bf16.msra.mxu0 0
    %458 = vmatprep.mubr.bf16.mxu0 %v424
    %459 = vmatmul.mubr.bf16.gmra.mrb[0].mxu0 %v180
    %v460 = vpop.f32.mrb[0].mxu0
    %v461 = vadd.f32 0.0, %v460
    %v462 = vpop.f32.mrb[0].mxu0
    %v463 = vadd.f32 0.0, %v462
    %v464 = vpop.f32.mrb[0].mxu0
    %v465 = vpop.f32.mrb[0].mxu0
    %466 = vdwg.mxu0
    %467 = vmatprep.subr.bf16.mxu0 0
    %468 = vmatpush1.bf16.msra.mxu0 %v352
    %469 = vmatprep.subr.bf16.mxu0 0
    %470 = vmatpush1.bf16.msra.mxu0 %v355
    %471 = vmatprep.subr.bf16.mxu0 0
    %472 = vmatpush1.bf16.msra.mxu0 %v358
    %473 = vmatprep.subr.bf16.mxu0 0
    %474 = vmatpush1.bf16.msra.mxu0 %v361
    %475 = vmatprep.subr.bf16.mxu0 0
    %476 = vmatpush1.bf16.msra.mxu0 %v364
    %477 = vmatprep.subr.bf16.mxu0 0
    %478 = vmatpush1.bf16.msra.mxu0 %v367
    %479 = vmatprep.subr.bf16.mxu0 0
    %480 = vmatpush1.bf16.msra.mxu0 %v370
    %481 = vmatprep.subr.bf16.mxu0 0
    %482 = vmatpush1.bf16.msra.mxu0 %v373
    %483 = vmatprep.subr.bf16.mxu0 0
    %484 = vmatpush1.bf16.msra.mxu0 %v376
    %485 = vmatprep.subr.bf16.mxu0 0
    %486 = vmatpush1.bf16.msra.mxu0 %v379
    %487 = vmatprep.subr.bf16.mxu0 0
    %488 = vmatpush1.bf16.msra.mxu0 %v382
    %489 = vmatprep.subr.bf16.mxu0 0
    %490 = vmatpush1.bf16.msra.mxu0 %v385
    %491 = vmatprep.subr.bf16.mxu0 0
    %492 = vmatpush1.bf16.msra.mxu0 0
    %493 = vmatprep.subr.bf16.mxu0 0
    %494 = vmatpush1.bf16.msra.mxu0 0
    %495 = vmatprep.subr.bf16.mxu0 0
    %496 = vmatpush1.bf16.msra.mxu0 0
    %497 = vmatprep.subr.bf16.mxu0 0
    %498 = vmatpush1.bf16.msra.mxu0 0
    %499 = vmatprep.mubr.bf16.mxu0 %v424
    %500 = vmatmul.mubr.bf16.gmra.mrb[0].mxu0 %v180
    %v501 = vpop.f32.mrb[0].mxu0
    %v502 = vadd.f32 0.0, %v501
    %v503 = vpop.f32.mrb[0].mxu0
    %v504 = vpop.f32.mrb[0].mxu0
    %v505 = vpop.f32.mrb[0].mxu0
    %506 = vdwg.mxu0
    %v507 = vmax.f32 %v461, 0.0
    %v508 = vmax.f32 %v463, 0.0
    %v509 = vmax.f32 %v502, 0.0
    %v510 = vpack.c.bf16 %v507, %v507
    %v511 = vpack.c.bf16 %v508, %v508
    %v512 = vpack.c.bf16 %v509, %v509
    %v513 = vld [vmem:[#allocation8] sm:$0xff]
    %v514 = vld [vmem:[#allocation8 + $0x8] sm:$0xff]
    %v515 = vld [vmem:[#allocation8 + $0x10] sm:$0xff]
    %v516 = vld [vmem:[#allocation8 + $0x18] sm:$0xff]
    %v517 = vld [vmem:[#allocation8 + $0x20] sm:$0xff]
    %v518 = vld [vmem:[#allocation8 + $0x28] sm:$0xff]
    %v519 = vld [vmem:[#allocation8 + $0x30] sm:$0xff]
    %v520 = vld [vmem:[#allocation8 + $0x38] sm:$0xff]
    %v521 = vld [vmem:[#allocation8 + $0x40] sm:$0xff]
    %v522 = vld [vmem:[#allocation8 + $0x48] sm:$0xff]
    %v523 = vld [vmem:[#allocation8 + $0x50] sm:$0xff]
    %v524 = vld [vmem:[#allocation8 + $0x58] sm:$0xff]
    %v525 = vld [vmem:[#allocation8 + $0x60] sm:$0xff]
    %v526 = vld [vmem:[#allocation8 + $0x68] sm:$0xff]
    %v527 = vld [vmem:[#allocation8 + $0x70] sm:$0xff]
    %v528 = vld [vmem:[#allocation8 + $0x78] sm:$0xff]
    %v529 = vld [vmem:[#allocation8 + $0x80] sm:$0xff]
    %v530 = vld [vmem:[#allocation8 + $0x88] sm:$0xff]
    %v531 = vld [vmem:[#allocation8 + $0x90] sm:$0xff]
    %v532 = vld [vmem:[#allocation8 + $0x98] sm:$0xff]
    %v533 = vld [vmem:[#allocation8 + $0xa0] sm:$0xff]
    %v534 = vld [vmem:[#allocation8 + $0xa8] sm:$0xff]
    %v535 = vld [vmem:[#allocation8 + $0xb0] sm:$0xff]
    %v536 = vld [vmem:[#allocation8 + $0xb8] sm:$0xff]
    %v537 = vld [vmem:[#allocation8 + $0xc0] sm:$0xff]
    %v538 = vld [vmem:[#allocation8 + $0xc8] sm:$0xff]
    %v539 = vld [vmem:[#allocation8 + $0xd0] sm:$0xff]
    %v540 = vld [vmem:[#allocation8 + $0xd8] sm:$0xff]
    %v541 = vld [vmem:[#allocation8 + $0xe0] sm:$0xff]
    %v542 = vld [vmem:[#allocation8 + $0xe8] sm:$0xff]
    %v543 = vld [vmem:[#allocation8 + $0xf0] sm:$0xff]
    %v544 = vld [vmem:[#allocation8 + $0xf8] sm:$0xff]
    %v545 = vld [vmem:[#allocation8 + $0x100] sm:$0xff]
    %v546 = vld [vmem:[#allocation8 + $0x108] sm:$0xff]
    %v547 = vld [vmem:[#allocation8 + $0x110] sm:$0xff]
    %v548 = vld [vmem:[#allocation8 + $0x118] sm:$0xff]
    %v549 = vld [vmem:[#allocation8 + $0x120] sm:$0xff]
    %v550 = vld [vmem:[#allocation8 + $0x128] sm:$0xff]
    %v551 = vld [vmem:[#allocation8 + $0x130] sm:$0xff]
    %v552 = vld [vmem:[#allocation8 + $0x138] sm:$0xff]
    %v553 = vld [vmem:[#allocation8 + $0x140] sm:$0xff]
    %v554 = vld [vmem:[#allocation8 + $0x148] sm:$0xff]
    %v555 = vld [vmem:[#allocation8 + $0x150] sm:$0xff]
    %v556 = vld [vmem:[#allocation8 + $0x158] sm:$0xff]
    %v557 = vld [vmem:[#allocation8 + $0x160] sm:$0xff]
    %v558 = vld [vmem:[#allocation8 + $0x168] sm:$0xff]
    %v559 = vld [vmem:[#allocation8 + $0x170] sm:$0xff]
    %v560 = vld [vmem:[#allocation8 + $0x178] sm:$0xff]
    %v561 = vld [vmem:[#allocation8 + $0x180] sm:$0xff]
    %v562 = vld [vmem:[#allocation8 + $0x188] sm:$0xff]
    %v563 = vld [vmem:[#allocation8 + $0x190] sm:$0xff]
    %v564 = vld [vmem:[#allocation8 + $0x198] sm:$0xff]
    %v565 = vld [vmem:[#allocation8 + $0x1a0] sm:$0xff]
    %v566 = vld [vmem:[#allocation8 + $0x1a8] sm:$0xff]
    %v567 = vld [vmem:[#allocation8 + $0x1b0] sm:$0xff]
    %v568 = vld [vmem:[#allocation8 + $0x1b8] sm:$0xff]
    %v569 = vld [vmem:[#allocation8 + $0x1c0] sm:$0xff]
    %v570 = vld [vmem:[#allocation8 + $0x1c8] sm:$0xff]
    %v571 = vld [vmem:[#allocation8 + $0x1d0] sm:$0xff]
    %v572 = vld [vmem:[#allocation8 + $0x1d8] sm:$0xff]
    %v573 = vld [vmem:[#allocation8 + $0x1e0] sm:$0xff]
    %v574 = vld [vmem:[#allocation8 + $0x1e8] sm:$0xff]
    %v575 = vld [vmem:[#allocation8 + $0x1f0] sm:$0xff]
    %v576 = vld [vmem:[#allocation8 + $0x1f8] sm:$0xff]
    %v577 = vld [vmem:[#allocation8 + $0x200] sm:$0xff]
    %v578 = vld [vmem:[#allocation8 + $0x208] sm:$0xff]
    %v579 = vld [vmem:[#allocation8 + $0x210] sm:$0xff]
    %v580 = vld [vmem:[#allocation8 + $0x218] sm:$0xff]
    %v581 = vld [vmem:[#allocation8 + $0x220] sm:$0xff]
    %v582 = vld [vmem:[#allocation8 + $0x228] sm:$0xff]
    %v583 = vld [vmem:[#allocation8 + $0x230] sm:$0xff]
    %v584 = vld [vmem:[#allocation8 + $0x238] sm:$0xff]
    %v585 = vld [vmem:[#allocation8 + $0x240] sm:$0xff]
    %v586 = vld [vmem:[#allocation8 + $0x248] sm:$0xff]
    %v587 = vld [vmem:[#allocation8 + $0x250] sm:$0xff]
    %v588 = vld [vmem:[#allocation8 + $0x258] sm:$0xff]
    %v589 = vld [vmem:[#allocation8 + $0x260] sm:$0xff]
    %v590 = vld [vmem:[#allocation8 + $0x268] sm:$0xff]
    %v591 = vld [vmem:[#allocation8 + $0x270] sm:$0xff]
    %v592 = vld [vmem:[#allocation8 + $0x278] sm:$0xff]
    %v593 = vld [vmem:[#allocation8 + $0x280] sm:$0xff]
    %v594 = vld [vmem:[#allocation8 + $0x288] sm:$0xff]
    %v595 = vld [vmem:[#allocation8 + $0x290] sm:$0xff]
    %v596 = vld [vmem:[#allocation8 + $0x298] sm:$0xff]
    %v597 = vld [vmem:[#allocation8 + $0x2a0] sm:$0xff]
    %v598 = vld [vmem:[#allocation8 + $0x2a8] sm:$0xff]
    %v599 = vld [vmem:[#allocation8 + $0x2b0] sm:$0xff]
    %v600 = vld [vmem:[#allocation8 + $0x2b8] sm:$0xff]
    %v601 = vld [vmem:[#allocation8 + $0x2c0] sm:$0xff]
    %v602 = vld [vmem:[#allocation8 + $0x2c8] sm:$0xff]
    %v603 = vld [vmem:[#allocation8 + $0x2d0] sm:$0xff]
    %v604 = vld [vmem:[#allocation8 + $0x2d8] sm:$0xff]
    %v605 = vld [vmem:[#allocation8 + $0x2e0] sm:$0xff]
    %v606 = vld [vmem:[#allocation8 + $0x2e8] sm:$0xff]
    %v607 = vld [vmem:[#allocation8 + $0x2f0] sm:$0xff]
    %v608 = vld [vmem:[#allocation8 + $0x2f8] sm:$0xff]
    %v609 = vld [vmem:[#allocation8 + $0x300] sm:$0xff]
    %v610 = vld [vmem:[#allocation8 + $0x308] sm:$0xff]
    %v611 = vld [vmem:[#allocation8 + $0x310] sm:$0xff]
    %v612 = vld [vmem:[#allocation8 + $0x318] sm:$0xff]
    %v613 = vld [vmem:[#allocation8 + $0x320] sm:$0xff]
    %v614 = vld [vmem:[#allocation8 + $0x328] sm:$0xff]
    %v615 = vld [vmem:[#allocation8 + $0x330] sm:$0xff]
    %v616 = vld [vmem:[#allocation8 + $0x338] sm:$0xff]
    %v617 = vld [vmem:[#allocation8 + $0x340] sm:$0xff]
    %v618 = vld [vmem:[#allocation8 + $0x348] sm:$0xff]
    %v619 = vld [vmem:[#allocation8 + $0x350] sm:$0xff]
    %v620 = vld [vmem:[#allocation8 + $0x358] sm:$0xff]
    %v621 = vld [vmem:[#allocation8 + $0x360] sm:$0xff]
    %v622 = vld [vmem:[#allocation8 + $0x368] sm:$0xff]
    %v623 = vld [vmem:[#allocation8 + $0x370] sm:$0xff]
    %v624 = vld [vmem:[#allocation8 + $0x378] sm:$0xff]
    %v625 = vld [vmem:[#allocation8 + $0x380] sm:$0xff]
    %v626 = vld [vmem:[#allocation8 + $0x388] sm:$0xff]
    %v627 = vld [vmem:[#allocation8 + $0x390] sm:$0xff]
    %v628 = vld [vmem:[#allocation8 + $0x398] sm:$0xff]
    %v629 = vld [vmem:[#allocation8 + $0x3a0] sm:$0xff]
    %v630 = vld [vmem:[#allocation8 + $0x3a8] sm:$0xff]
    %v631 = vld [vmem:[#allocation8 + $0x3b0] sm:$0xff]
    %v632 = vld [vmem:[#allocation8 + $0x3b8] sm:$0xff]
    %v633 = vld [vmem:[#allocation8 + $0x3c0] sm:$0xff]
    %v634 = vld [vmem:[#allocation8 + $0x3c8] sm:$0xff]
    %v635 = vld [vmem:[#allocation8 + $0x3d0] sm:$0xff]
    %v636 = vld [vmem:[#allocation8 + $0x3d8] sm:$0xff]
    %v637 = vld [vmem:[#allocation8 + $0x3e0] sm:$0xff]
    %v638 = vld [vmem:[#allocation8 + $0x3e8] sm:$0xff]
    %v639 = vld [vmem:[#allocation8 + $0x3f0] sm:$0xff]
    %v640 = vld [vmem:[#allocation8 + $0x3f8] sm:$0xff]
    %v641 = vld [vmem:[#allocation8 + $0x400] sm:$0xff]
    %v642 = vld [vmem:[#allocation8 + $0x408] sm:$0xff]
    %v643 = vld [vmem:[#allocation8 + $0x410] sm:$0xff]
    %v644 = vld [vmem:[#allocation8 + $0x418] sm:$0xff]
    %v645 = vld [vmem:[#allocation8 + $0x420] sm:$0xff]
    %v646 = vld [vmem:[#allocation8 + $0x428] sm:$0xff]
    %v647 = vld [vmem:[#allocation8 + $0x430] sm:$0xff]
    %v648 = vld [vmem:[#allocation8 + $0x438] sm:$0xff]
    %v649 = vld [vmem:[#allocation8 + $0x440] sm:$0xff]
    %v650 = vld [vmem:[#allocation8 + $0x448] sm:$0xff]
    %v651 = vld [vmem:[#allocation8 + $0x450] sm:$0xff]
    %v652 = vld [vmem:[#allocation8 + $0x458] sm:$0xff]
    %v653 = vld [vmem:[#allocation8 + $0x460] sm:$0xff]
    %v654 = vld [vmem:[#allocation8 + $0x468] sm:$0xff]
    %v655 = vld [vmem:[#allocation8 + $0x470] sm:$0xff]
    %v656 = vld [vmem:[#allocation8 + $0x478] sm:$0xff]
    %v801 = vunpack.c.l.b16 %v513
    %v802 = vunpack.c.h.b16 %v513
    %v803 = vunpack.c.l.b16 %v514
    %v804 = vunpack.c.h.b16 %v514
    %v805 = vunpack.c.l.b16 %v515
    %v806 = vunpack.c.h.b16 %v515
    %v807 = vunpack.c.l.b16 %v516
    %v808 = vunpack.c.h.b16 %v516
    %v809 = vunpack.c.l.b16 %v517
    %v810 = vunpack.c.h.b16 %v517
    %v811 = vunpack.c.l.b16 %v518
    %v812 = vunpack.c.h.b16 %v518
    %v813 = vunpack.c.l.b16 %v519
    %v814 = vunpack.c.h.b16 %v519
    %v815 = vunpack.c.l.b16 %v520
    %v816 = vunpack.c.h.b16 %v520
    %v817 = vunpack.c.l.b16 %v521
    %v818 = vunpack.c.h.b16 %v521
    %v819 = vunpack.c.l.b16 %v522
    %v820 = vunpack.c.h.b16 %v522
    %v821 = vunpack.c.l.b16 %v523
    %v822 = vunpack.c.h.b16 %v523
    %v823 = vunpack.c.l.b16 %v524
    %v824 = vunpack.c.h.b16 %v524
    %v825 = vunpack.c.l.b16 %v525
    %v826 = vunpack.c.h.b16 %v525
    %v827 = vunpack.c.l.b16 %v526
    %v828 = vunpack.c.h.b16 %v526
    %v829 = vunpack.c.l.b16 %v527
    %v830 = vunpack.c.h.b16 %v527
    %v831 = vunpack.c.l.b16 %v528
    %v832 = vunpack.c.h.b16 %v528
    %v833 = vunpack.c.l.b16 %v529
    %v834 = vunpack.c.h.b16 %v529
    %v835 = vunpack.c.l.b16 %v530
    %v836 = vunpack.c.h.b16 %v530
    %v837 = vunpack.c.l.b16 %v531
    %v838 = vunpack.c.h.b16 %v531
    %v839 = vunpack.c.l.b16 %v532
    %v840 = vunpack.c.h.b16 %v532
    %v841 = vunpack.c.l.b16 %v533
    %v842 = vunpack.c.h.b16 %v533
    %v843 = vunpack.c.l.b16 %v534
    %v844 = vunpack.c.h.b16 %v534
    %v845 = vunpack.c.l.b16 %v535
    %v846 = vunpack.c.h.b16 %v535
    %v847 = vunpack.c.l.b16 %v536
    %v848 = vunpack.c.h.b16 %v536
    %v849 = vunpack.c.l.b16 %v537
    %v850 = vunpack.c.h.b16 %v537
    %v851 = vunpack.c.l.b16 %v538
    %v852 = vunpack.c.h.b16 %v538
    %v853 = vunpack.c.l.b16 %v539
    %v854 = vunpack.c.h.b16 %v539
    %v855 = vunpack.c.l.b16 %v540
    %v856 = vunpack.c.h.b16 %v540
    %v857 = vunpack.c.l.b16 %v541
    %v858 = vunpack.c.h.b16 %v541
    %v859 = vunpack.c.l.b16 %v542
    %v860 = vunpack.c.h.b16 %v542
    %v861 = vunpack.c.l.b16 %v543
    %v862 = vunpack.c.h.b16 %v543
    %v863 = vunpack.c.l.b16 %v544
    %v864 = vunpack.c.h.b16 %v544
    %v865 = vunpack.c.l.b16 %v545
    %v866 = vunpack.c.h.b16 %v545
    %v867 = vunpack.c.l.b16 %v546
    %v868 = vunpack.c.h.b16 %v546
    %v869 = vunpack.c.l.b16 %v547
    %v870 = vunpack.c.h.b16 %v547
    %v871 = vunpack.c.l.b16 %v548
    %v872 = vunpack.c.h.b16 %v548
    %v873 = vunpack.c.l.b16 %v549
    %v874 = vunpack.c.h.b16 %v549
    %v875 = vunpack.c.l.b16 %v550
    %v876 = vunpack.c.h.b16 %v550
    %v877 = vunpack.c.l.b16 %v551
    %v878 = vunpack.c.h.b16 %v551
    %v879 = vunpack.c.l.b16 %v552
    %v880 = vunpack.c.h.b16 %v552
    %v881 = vunpack.c.l.b16 %v553
    %v882 = vunpack.c.h.b16 %v553
    %v883 = vunpack.c.l.b16 %v554
    %v884 = vunpack.c.h.b16 %v554
    %v885 = vunpack.c.l.b16 %v555
    %v886 = vunpack.c.h.b16 %v555
    %v887 = vunpack.c.l.b16 %v556
    %v888 = vunpack.c.h.b16 %v556
    %v889 = vunpack.c.l.b16 %v557
    %v890 = vunpack.c.h.b16 %v557
    %v891 = vunpack.c.l.b16 %v558
    %v892 = vunpack.c.h.b16 %v558
    %v893 = vunpack.c.l.b16 %v559
    %v894 = vunpack.c.h.b16 %v559
    %v895 = vunpack.c.l.b16 %v560
    %v896 = vunpack.c.h.b16 %v560
    %v897 = vunpack.c.l.b16 %v561
    %v898 = vunpack.c.h.b16 %v561
    %v899 = vunpack.c.l.b16 %v562
    %v900 = vunpack.c.h.b16 %v562
    %v901 = vunpack.c.l.b16 %v563
    %v902 = vunpack.c.h.b16 %v563
    %v903 = vunpack.c.l.b16 %v564
    %v904 = vunpack.c.h.b16 %v564
    %v905 = vunpack.c.l.b16 %v565
    %v906 = vunpack.c.h.b16 %v565
    %v907 = vunpack.c.l.b16 %v566
    %v908 = vunpack.c.h.b16 %v566
    %v909 = vunpack.c.l.b16 %v567
    %v910 = vunpack.c.h.b16 %v567
    %v911 = vunpack.c.l.b16 %v568
    %v912 = vunpack.c.h.b16 %v568
    %v913 = vunpack.c.l.b16 %v569
    %v914 = vunpack.c.h.b16 %v569
    %v915 = vunpack.c.l.b16 %v570
    %v916 = vunpack.c.h.b16 %v570
    %v917 = vunpack.c.l.b16 %v571
    %v918 = vunpack.c.h.b16 %v571
    %v919 = vunpack.c.l.b16 %v572
    %v920 = vunpack.c.h.b16 %v572
    %v921 = vunpack.c.l.b16 %v573
    %v922 = vunpack.c.h.b16 %v573
    %v923 = vunpack.c.l.b16 %v574
    %v924 = vunpack.c.h.b16 %v574
    %v925 = vunpack.c.l.b16 %v575
    %v926 = vunpack.c.h.b16 %v575
    %v927 = vunpack.c.l.b16 %v576
    %v928 = vunpack.c.h.b16 %v576
    %v929 = vunpack.c.l.b16 %v577
    %v930 = vunpack.c.h.b16 %v577
    %v931 = vunpack.c.l.b16 %v578
    %v932 = vunpack.c.h.b16 %v578
    %v933 = vunpack.c.l.b16 %v579
    %v934 = vunpack.c.h.b16 %v579
    %v935 = vunpack.c.l.b16 %v580
    %v936 = vunpack.c.h.b16 %v580
    %v937 = vunpack.c.l.b16 %v581
    %v938 = vunpack.c.h.b16 %v581
    %v939 = vunpack.c.l.b16 %v582
    %v940 = vunpack.c.h.b16 %v582
    %v941 = vunpack.c.l.b16 %v583
    %v942 = vunpack.c.h.b16 %v583
    %v943 = vunpack.c.l.b16 %v584
    %v944 = vunpack.c.h.b16 %v584
    %v945 = vunpack.c.l.b16 %v585
    %v946 = vunpack.c.h.b16 %v585
    %v947 = vunpack.c.l.b16 %v586
    %v948 = vunpack.c.h.b16 %v586
    %v949 = vunpack.c.l.b16 %v587
    %v950 = vunpack.c.h.b16 %v587
    %v951 = vunpack.c.l.b16 %v588
    %v952 = vunpack.c.h.b16 %v588
    %v953 = vunpack.c.l.b16 %v589
    %v954 = vunpack.c.h.b16 %v589
    %v955 = vunpack.c.l.b16 %v590
    %v956 = vunpack.c.h.b16 %v590
    %v957 = vunpack.c.l.b16 %v591
    %v958 = vunpack.c.h.b16 %v591
    %v959 = vunpack.c.l.b16 %v592
    %v960 = vunpack.c.h.b16 %v592
    %v961 = vunpack.c.l.b16 %v593
    %v962 = vunpack.c.h.b16 %v593
    %v963 = vunpack.c.l.b16 %v594
    %v964 = vunpack.c.h.b16 %v594
    %v965 = vunpack.c.l.b16 %v595
    %v966 = vunpack.c.h.b16 %v595
    %v967 = vunpack.c.l.b16 %v596
    %v968 = vunpack.c.h.b16 %v596
    %v969 = vunpack.c.l.b16 %v597
    %v970 = vunpack.c.h.b16 %v597
    %v971 = vunpack.c.l.b16 %v598
    %v972 = vunpack.c.h.b16 %v598
    %v973 = vunpack.c.l.b16 %v599
    %v974 = vunpack.c.h.b16 %v599
    %v975 = vunpack.c.l.b16 %v600
    %v976 = vunpack.c.h.b16 %v600
    %v977 = vunpack.c.l.b16 %v601
    %v978 = vunpack.c.h.b16 %v601
    %v979 = vunpack.c.l.b16 %v602
    %v980 = vunpack.c.h.b16 %v602
    %v981 = vunpack.c.l.b16 %v603
    %v982 = vunpack.c.h.b16 %v603
    %v983 = vunpack.c.l.b16 %v604
    %v984 = vunpack.c.h.b16 %v604
    %v985 = vunpack.c.l.b16 %v605
    %v986 = vunpack.c.h.b16 %v605
    %v987 = vunpack.c.l.b16 %v606
    %v988 = vunpack.c.h.b16 %v606
    %v989 = vunpack.c.l.b16 %v607
    %v990 = vunpack.c.h.b16 %v607
    %v991 = vunpack.c.l.b16 %v608
    %v992 = vunpack.c.h.b16 %v608
    %v993 = vunpack.c.l.b16 %v609
    %v994 = vunpack.c.h.b16 %v609
    %v995 = vunpack.c.l.b16 %v610
    %v996 = vunpack.c.h.b16 %v610
    %v997 = vunpack.c.l.b16 %v611
    %v998 = vunpack.c.h.b16 %v611
    %v999 = vunpack.c.l.b16 %v612
    %v1000 = vunpack.c.h.b16 %v612
    %v1001 = vunpack.c.l.b16 %v613
    %v1002 = vunpack.c.h.b16 %v613
    %v1003 = vunpack.c.l.b16 %v614
    %v1004 = vunpack.c.h.b16 %v614
    %v1005 = vunpack.c.l.b16 %v615
    %v1006 = vunpack.c.h.b16 %v615
    %v1007 = vunpack.c.l.b16 %v616
    %v1008 = vunpack.c.h.b16 %v616
    %v1009 = vunpack.c.l.b16 %v617
    %v1010 = vunpack.c.h.b16 %v617
    %v1011 = vunpack.c.l.b16 %v618
    %v1012 = vunpack.c.h.b16 %v618
    %v1013 = vunpack.c.l.b16 %v619
    %v1014 = vunpack.c.h.b16 %v619
    %v1015 = vunpack.c.l.b16 %v620
    %v1016 = vunpack.c.h.b16 %v620
    %v1017 = vunpack.c.l.b16 %v621
    %v1018 = vunpack.c.h.b16 %v621
    %v1019 = vunpack.c.l.b16 %v622
    %v1020 = vunpack.c.h.b16 %v622
    %v1021 = vunpack.c.l.b16 %v623
    %v1022 = vunpack.c.h.b16 %v623
    %v1023 = vunpack.c.l.b16 %v624
    %v1024 = vunpack.c.h.b16 %v624
    %v1025 = vunpack.c.l.b16 %v625
    %v1026 = vunpack.c.h.b16 %v625
    %v1027 = vunpack.c.l.b16 %v626
    %v1028 = vunpack.c.h.b16 %v626
    %v1029 = vunpack.c.l.b16 %v627
    %v1030 = vunpack.c.h.b16 %v627
    %v1031 = vunpack.c.l.b16 %v628
    %v1032 = vunpack.c.h.b16 %v628
    %v1033 = vunpack.c.l.b16 %v629
    %v1034 = vunpack.c.h.b16 %v629
    %v1035 = vunpack.c.l.b16 %v630
    %v1036 = vunpack.c.h.b16 %v630
    %v1037 = vunpack.c.l.b16 %v631
    %v1038 = vunpack.c.h.b16 %v631
    %v1039 = vunpack.c.l.b16 %v632
    %v1040 = vunpack.c.h.b16 %v632
    %v1041 = vunpack.c.l.b16 %v633
    %v1042 = vunpack.c.h.b16 %v633
    %v1043 = vunpack.c.l.b16 %v634
    %v1044 = vunpack.c.h.b16 %v634
    %v1045 = vunpack.c.l.b16 %v635
    %v1046 = vunpack.c.h.b16 %v635
    %v1047 = vunpack.c.l.b16 %v636
    %v1048 = vunpack.c.h.b16 %v636
    %v1049 = vunpack.c.l.b16 %v637
    %v1050 = vunpack.c.h.b16 %v637
    %v1051 = vunpack.c.l.b16 %v638
    %v1052 = vunpack.c.h.b16 %v638
    %v1053 = vunpack.c.l.b16 %v639
    %v1054 = vunpack.c.h.b16 %v639
    %v1055 = vunpack.c.l.b16 %v640
    %v1056 = vunpack.c.h.b16 %v640
    %v1057 = vunpack.c.l.b16 %v641
    %v1058 = vunpack.c.h.b16 %v641
    %v1059 = vunpack.c.l.b16 %v642
    %v1060 = vunpack.c.h.b16 %v642
    %v1061 = vunpack.c.l.b16 %v643
    %v1062 = vunpack.c.h.b16 %v643
    %v1063 = vunpack.c.l.b16 %v644
    %v1064 = vunpack.c.h.b16 %v644
    %v1065 = vunpack.c.l.b16 %v645
    %v1066 = vunpack.c.h.b16 %v645
    %v1067 = vunpack.c.l.b16 %v646
    %v1068 = vunpack.c.h.b16 %v646
    %v1069 = vunpack.c.l.b16 %v647
    %v1070 = vunpack.c.h.b16 %v647
    %v1071 = vunpack.c.l.b16 %v648
    %v1072 = vunpack.c.h.b16 %v648
    %v1073 = vunpack.c.l.b16 %v649
    %v1074 = vunpack.c.h.b16 %v649
    %v1075 = vunpack.c.l.b16 %v650
    %v1076 = vunpack.c.h.b16 %v650
    %v1077 = vunpack.c.l.b16 %v651
    %v1078 = vunpack.c.h.b16 %v651
    %v1079 = vunpack.c.l.b16 %v652
    %v1080 = vunpack.c.h.b16 %v652
    %v1081 = vunpack.c.l.b16 %v653
    %v1082 = vunpack.c.h.b16 %v653
    %v1083 = vunpack.c.l.b16 %v654
    %v1084 = vunpack.c.h.b16 %v654
    %v1085 = vunpack.c.l.b16 %v655
    %v1086 = vunpack.c.h.b16 %v655
    %v1087 = vunpack.c.l.b16 %v656
    %v1088 = vunpack.c.h.b16 %v656
    %v1089 = vpack.c.b16 %v807, %v801
    %v1090 = vpack.c.b16 %v808, %v802
    %v1091 = vpack.c.b16 %v809, %v803
    %v1092 = vpack.c.b16 %v810, %v804
    %v1093 = vpack.c.b16 %v811, %v805
    %v1094 = vpack.c.b16 %v812, %v806
    %v1095 = vpack.c.b16 %v819, %v813
    %v1096 = vpack.c.b16 %v820, %v814
    %v1097 = vpack.c.b16 %v821, %v815
    %v1098 = vpack.c.b16 %v822, %v816
    %v1099 = vpack.c.b16 %v823, %v817
    %v1100 = vpack.c.b16 %v824, %v818
    %v1101 = vpack.c.b16 %v831, %v825
    %v1102 = vpack.c.b16 %v832, %v826
    %v1103 = vpack.c.b16 %v833, %v827
    %v1104 = vpack.c.b16 %v834, %v828
    %v1105 = vpack.c.b16 %v835, %v829
    %v1106 = vpack.c.b16 %v836, %v830
    %v1107 = vpack.c.b16 %v843, %v837
    %v1108 = vpack.c.b16 %v844, %v838
    %v1109 = vpack.c.b16 %v845, %v839
    %v1110 = vpack.c.b16 %v846, %v840
    %v1111 = vpack.c.b16 %v847, %v841
    %v1112 = vpack.c.b16 %v848, %v842
    %v1113 = vpack.c.b16 %v855, %v849
    %v1114 = vpack.c.b16 %v856, %v850
    %v1115 = vpack.c.b16 %v857, %v851
    %v1116 = vpack.c.b16 %v858, %v852
    %v1117 = vpack.c.b16 %v859, %v853
    %v1118 = vpack.c.b16 %v860, %v854
    %v1119 = vpack.c.b16 %v867, %v861
    %v1120 = vpack.c.b16 %v868, %v862
    %v1121 = vpack.c.b16 %v869, %v863
    %v1122 = vpack.c.b16 %v870, %v864
    %v1123 = vpack.c.b16 %v871, %v865
    %v1124 = vpack.c.b16 %v872, %v866
    %v1125 = vpack.c.b16 %v879, %v873
    %v1126 = vpack.c.b16 %v880, %v874
    %v1127 = vpack.c.b16 %v881, %v875
    %v1128 = vpack.c.b16 %v882, %v876
    %v1129 = vpack.c.b16 %v883, %v877
    %v1130 = vpack.c.b16 %v884, %v878
    %v1131 = vpack.c.b16 %v891, %v885
    %v1132 = vpack.c.b16 %v892, %v886
    %v1133 = vpack.c.b16 %v893, %v887
    %v1134 = vpack.c.b16 %v894, %v888
    %v1135 = vpack.c.b16 %v895, %v889
    %v1136 = vpack.c.b16 %v896, %v890
    %v1137 = vpack.c.b16 %v903, %v897
    %v1138 = vpack.c.b16 %v904, %v898
    %v1139 = vpack.c.b16 %v905, %v899
    %v1140 = vpack.c.b16 %v906, %v900
    %v1141 = vpack.c.b16 %v907, %v901
    %v1142 = vpack.c.b16 %v908, %v902
    %v1143 = vpack.c.b16 %v915, %v909
    %v1144 = vpack.c.b16 %v916, %v910
    %v1145 = vpack.c.b16 %v917, %v911
    %v1146 = vpack.c.b16 %v918, %v912
    %v1147 = vpack.c.b16 %v919, %v913
    %v1148 = vpack.c.b16 %v920, %v914
    %v1149 = vpack.c.b16 %v927, %v921
    %v1150 = vpack.c.b16 %v928, %v922
    %v1151 = vpack.c.b16 %v929, %v923
    %v1152 = vpack.c.b16 %v930, %v924
    %v1153 = vpack.c.b16 %v931, %v925
    %v1154 = vpack.c.b16 %v932, %v926
    %v1155 = vpack.c.b16 %v939, %v933
    %v1156 = vpack.c.b16 %v940, %v934
    %v1157 = vpack.c.b16 %v941, %v935
    %v1158 = vpack.c.b16 %v942, %v936
    %v1159 = vpack.c.b16 %v943, %v937
    %v1160 = vpack.c.b16 %v944, %v938
    %v1161 = vpack.c.b16 %v951, %v945
    %v1162 = vpack.c.b16 %v952, %v946
    %v1163 = vpack.c.b16 %v953, %v947
    %v1164 = vpack.c.b16 %v954, %v948
    %v1165 = vpack.c.b16 %v955, %v949
    %v1166 = vpack.c.b16 %v956, %v950
    %v1167 = vpack.c.b16 %v963, %v957
    %v1168 = vpack.c.b16 %v964, %v958
    %v1169 = vpack.c.b16 %v965, %v959
    %v1170 = vpack.c.b16 %v966, %v960
    %v1171 = vpack.c.b16 %v967, %v961
    %v1172 = vpack.c.b16 %v968, %v962
    %v1173 = vpack.c.b16 %v975, %v969
    %v1174 = vpack.c.b16 %v976, %v970
    %v1175 = vpack.c.b16 %v977, %v971
    %v1176 = vpack.c.b16 %v978, %v972
    %v1177 = vpack.c.b16 %v979, %v973
    %v1178 = vpack.c.b16 %v980, %v974
    %v1179 = vpack.c.b16 %v987, %v981
    %v1180 = vpack.c.b16 %v988, %v982
    %v1181 = vpack.c.b16 %v989, %v983
    %v1182 = vpack.c.b16 %v990, %v984
    %v1183 = vpack.c.b16 %v991, %v985
    %v1184 = vpack.c.b16 %v992, %v986
    %v1185 = vpack.c.b16 %v999, %v993
    %v1186 = vpack.c.b16 %v1000, %v994
    %v1187 = vpack.c.b16 %v1001, %v995
    %v1188 = vpack.c.b16 %v1002, %v996
    %v1189 = vpack.c.b16 %v1003, %v997
    %v1190 = vpack.c.b16 %v1004, %v998
    %v1191 = vpack.c.b16 %v1011, %v1005
    %v1192 = vpack.c.b16 %v1012, %v1006
    %v1193 = vpack.c.b16 %v1013, %v1007
    %v1194 = vpack.c.b16 %v1014, %v1008
    %v1195 = vpack.c.b16 %v1015, %v1009
    %v1196 = vpack.c.b16 %v1016, %v1010
    %v1197 = vpack.c.b16 %v1023, %v1017
    %v1198 = vpack.c.b16 %v1024, %v1018
    %v1199 = vpack.c.b16 %v1025, %v1019
    %v1200 = vpack.c.b16 %v1026, %v1020
    %v1201 = vpack.c.b16 %v1027, %v1021
    %v1202 = vpack.c.b16 %v1028, %v1022
    %v1203 = vpack.c.b16 %v1035, %v1029
    %v1204 = vpack.c.b16 %v1036, %v1030
    %v1205 = vpack.c.b16 %v1037, %v1031
    %v1206 = vpack.c.b16 %v1038, %v1032
    %v1207 = vpack.c.b16 %v1039, %v1033
    %v1208 = vpack.c.b16 %v1040, %v1034
    %v1209 = vpack.c.b16 %v1047, %v1041
    %v1210 = vpack.c.b16 %v1048, %v1042
    %v1211 = vpack.c.b16 %v1049, %v1043
    %v1212 = vpack.c.b16 %v1050, %v1044
    %v1213 = vpack.c.b16 %v1051, %v1045
    %v1214 = vpack.c.b16 %v1052, %v1046
    %v1215 = vpack.c.b16 %v1059, %v1053
    %v1216 = vpack.c.b16 %v1060, %v1054
    %v1217 = vpack.c.b16 %v1061, %v1055
    %v1218 = vpack.c.b16 %v1062, %v1056
    %v1219 = vpack.c.b16 %v1063, %v1057
    %v1220 = vpack.c.b16 %v1064, %v1058
    %v1221 = vpack.c.b16 %v1071, %v1065
    %v1222 = vpack.c.b16 %v1072, %v1066
    %v1223 = vpack.c.b16 %v1073, %v1067
    %v1224 = vpack.c.b16 %v1074, %v1068
    %v1225 = vpack.c.b16 %v1075, %v1069
    %v1226 = vpack.c.b16 %v1076, %v1070
    %v1227 = vpack.c.b16 %v1083, %v1077
    %v1228 = vpack.c.b16 %v1084, %v1078
    %v1229 = vpack.c.b16 %v1085, %v1079
    %v1230 = vpack.c.b16 %v1086, %v1080
    %v1231 = vpack.c.b16 %v1087, %v1081
    %v1232 = vpack.c.b16 %v1088, %v1082
    %1377 = vmatprep.subr.bf16.mxu0 %v1090
    %1378 = vmatpush1.bf16.msra.mxu0 %v1089
    %1379 = vmatprep.subr.bf16.mxu0 %v1096
    %1380 = vmatpush1.bf16.msra.mxu0 %v1095
    %1381 = vmatprep.subr.bf16.mxu0 %v1102
    %1382 = vmatpush1.bf16.msra.mxu0 %v1101
    %1383 = vmatprep.subr.bf16.mxu0 %v1108
    %1384 = vmatpush1.bf16.msra.mxu0 %v1107
    %1385 = vmatprep.subr.bf16.mxu0 %v1114
    %1386 = vmatpush1.bf16.msra.mxu0 %v1113
    %1387 = vmatprep.subr.bf16.mxu0 %v1120
    %1388 = vmatpush1.bf16.msra.mxu0 %v1119
    %1389 = vmatprep.subr.bf16.mxu0 %v1126
    %1390 = vmatpush1.bf16.msra.mxu0 %v1125
    %1391 = vmatprep.subr.bf16.mxu0 %v1132
    %1392 = vmatpush1.bf16.msra.mxu0 %v1131
    %1393 = vmatprep.subr.bf16.mxu0 %v1138
    %1394 = vmatpush1.bf16.msra.mxu0 %v1137
    %1395 = vmatprep.subr.bf16.mxu0 %v1144
    %1396 = vmatpush1.bf16.msra.mxu0 %v1143
    %1397 = vmatprep.subr.bf16.mxu0 %v1150
    %1398 = vmatpush1.bf16.msra.mxu0 %v1149
    %1399 = vmatprep.subr.bf16.mxu0 %v1156
    %1400 = vmatpush1.bf16.msra.mxu0 %v1155
    %1401 = vmatprep.subr.bf16.mxu0 %v1162
    %1402 = vmatpush1.bf16.msra.mxu0 %v1161
    %1403 = vmatprep.subr.bf16.mxu0 %v1168
    %1404 = vmatpush1.bf16.msra.mxu0 %v1167
    %1405 = vmatprep.subr.bf16.mxu0 %v1174
    %1406 = vmatpush1.bf16.msra.mxu0 %v1173
    %1407 = vmatprep.subr.bf16.mxu0 %v1180
    %1408 = vmatpush1.bf16.msra.mxu0 %v1179
    %1409 = vmatprep.mubr.bf16.mxu0 %v511
    %1410 = vmatmul.mubr.bf16.gmra.mrb[0].mxu0 %v510
    %v1411 = vpop.f32.mrb[0].mxu0
    %v1412 = vadd.f32 0.0, %v1411
    %v1413 = vpop.f32.mrb[0].mxu0
    %v1414 = vadd.f32 0.0, %v1413
    %v1415 = vpop.f32.mrb[0].mxu0
    %v1416 = vpop.f32.mrb[0].mxu0
    %1417 = vdwg.mxu0
    %1418 = vmatprep.subr.bf16.mxu0 %v1186
    %1419 = vmatpush1.bf16.msra.mxu0 %v1185
    %1420 = vmatprep.subr.bf16.mxu0 %v1192
    %1421 = vmatpush1.bf16.msra.mxu0 %v1191
    %1422 = vmatprep.subr.bf16.mxu0 %v1198
    %1423 = vmatpush1.bf16.msra.mxu0 %v1197
    %1424 = vmatprep.subr.bf16.mxu0 %v1204
    %1425 = vmatpush1.bf16.msra.mxu0 %v1203
    %1426 = vmatprep.subr.bf16.mxu0 %v1210
    %1427 = vmatpush1.bf16.msra.mxu0 %v1209
    %1428 = vmatprep.subr.bf16.mxu0 %v1216
    %1429 = vmatpush1.bf16.msra.mxu0 %v1215
    %1430 = vmatprep.subr.bf16.mxu0 %v1222
    %1431 = vmatpush1.bf16.msra.mxu0 %v1221
    %1432 = vmatprep.subr.bf16.mxu0 %v1228
    %1433 = vmatpush1.bf16.msra.mxu0 %v1227
    %1434 = vmatprep.subr.bf16.mxu0 0
    %1435 = vmatpush1.bf16.msra.mxu0 0
    %1436 = vmatprep.subr.bf16.mxu0 0
    %1437 = vmatpush1.bf16.msra.mxu0 0
    %1438 = vmatprep.subr.bf16.mxu0 0
    %1439 = vmatpush1.bf16.msra.mxu0 0
    %1440 = vmatprep.subr.bf16.mxu0 0
    %1441 = vmatpush1.bf16.msra.mxu0 0
    %1442 = vmatprep.subr.bf16.mxu0 0
    %1443 = vmatpush1.bf16.msra.mxu0 0
    %1444 = vmatprep.subr.bf16.mxu0 0
    %1445 = vmatpush1.bf16.msra.mxu0 0
    %1446 = vmatprep.subr.bf16.mxu0 0
    %1447 = vmatpush1.bf16.msra.mxu0 0
    %1448 = vmatprep.subr.bf16.mxu0 0
    %1449 = vmatpush1.bf16.msra.mxu0 0
    %1450 = vmatprep.mubr.bf16.mxu0 0
    %1451 = vmatmul.mubr.bf16.gmra.mrb[0].mxu0 %v512
    %v1452 = vpop.f32.mrb[0].mxu0
    %v1453 = vadd.f32 %v1412, %v1452
    %v1454 = vpop.f32.mrb[0].mxu0
    %v1455 = vadd.f32 %v1414, %v1454
    %v1456 = vpop.f32.mrb[0].mxu0
    %v1457 = vpop.f32.mrb[0].mxu0
    %1458 = vdwg.mxu0
    %1459 = vmatprep.subr.bf16.mxu0 %v1092
    %1460 = vmatpush1.bf16.msra.mxu0 %v1091
    %1461 = vmatprep.subr.bf16.mxu0 %v1098
    %1462 = vmatpush1.bf16.msra.mxu0 %v1097
    %1463 = vmatprep.subr.bf16.mxu0 %v1104
    %1464 = vmatpush1.bf16.msra.mxu0 %v1103
    %1465 = vmatprep.subr.bf16.mxu0 %v1110
    %1466 = vmatpush1.bf16.msra.mxu0 %v1109
    %1467 = vmatprep.subr.bf16.mxu0 %v1116
    %1468 = vmatpush1.bf16.msra.mxu0 %v1115
    %1469 = vmatprep.subr.bf16.mxu0 %v1122
    %1470 = vmatpush1.bf16.msra.mxu0 %v1121
    %1471 = vmatprep.subr.bf16.mxu0 %v1128
    %1472 = vmatpush1.bf16.msra.mxu0 %v1127
    %1473 = vmatprep.subr.bf16.mxu0 %v1134
    %1474 = vmatpush1.bf16.msra.mxu0 %v1133
    %1475 = vmatprep.subr.bf16.mxu0 %v1140
    %1476 = vmatpush1.bf16.msra.mxu0 %v1139
    %1477 = vmatprep.subr.bf16.mxu0 %v1146
    %1478 = vmatpush1.bf16.msra.mxu0 %v1145
    %1479 = vmatprep.subr.bf16.mxu0 %v1152
    %1480 = vmatpush1.bf16.msra.mxu0 %v1151
    %1481 = vmatprep.subr.bf16.mxu0 %v1158
    %1482 = vmatpush1.bf16.msra.mxu0 %v1157
    %1483 = vmatprep.subr.bf16.mxu0 %v1164
    %1484 = vmatpush1.bf16.msra.mxu0 %v1163
    %1485 = vmatprep.subr.bf16.mxu0 %v1170
    %1486 = vmatpush1.bf16.msra.mxu0 %v1169
    %1487 = vmatprep.subr.bf16.mxu0 %v1176
    %1488 = vmatpush1.bf16.msra.mxu0 %v1175
    %1489 = vmatprep.subr.bf16.mxu0 %v1182
    %1490 = vmatpush1.bf16.msra.mxu0 %v1181
    %1491 = vmatprep.mubr.bf16.mxu0 %v511
    %1492 = vmatmul.mubr.bf16.gmra.mrb[0].mxu0 %v510
    %v1493 = vpop.f32.mrb[0].mxu0
    %v1494 = vadd.f32 0.0, %v1493
    %v1495 = vpop.f32.mrb[0].mxu0
    %v1496 = vadd.f32 0.0, %v1495
    %v1497 = vpop.f32.mrb[0].mxu0
    %v1498 = vpop.f32.mrb[0].mxu0
    %1499 = vdwg.mxu0
    %1500 = vmatprep.subr.bf16.mxu0 %v1188
    %1501 = vmatpush1.bf16.msra.mxu0 %v1187
    %1502 = vmatprep.subr.bf16.mxu0 %v1194
    %1503 = vmatpush1.bf16.msra.mxu0 %v1193
    %1504 = vmatprep.subr.bf16.mxu0 %v1200
    %1505 = vmatpush1.bf16.msra.mxu0 %v1199
    %1506 = vmatprep.subr.bf16.mxu0 %v1206
    %1507 = vmatpush1.bf16.msra.mxu0 %v1205
    %1508 = vmatprep.subr.bf16.mxu0 %v1212
    %1509 = vmatpush1.bf16.msra.mxu0 %v1211
    %1510 = vmatprep.subr.bf16.mxu0 %v1218
    %1511 = vmatpush1.bf16.msra.mxu0 %v1217
    %1512 = vmatprep.subr.bf16.mxu0 %v1224
    %1513 = vmatpush1.bf16.msra.mxu0 %v1223
    %1514 = vmatprep.subr.bf16.mxu0 %v1230
    %1515 = vmatpush1.bf16.msra.mxu0 %v1229
    %1516 = vmatprep.subr.bf16.mxu0 0
    %1517 = vmatpush1.bf16.msra.mxu0 0
    %1518 = vmatprep.subr.bf16.mxu0 0
    %1519 = vmatpush1.bf16.msra.mxu0 0
    %1520 = vmatprep.subr.bf16.mxu0 0
    %1521 = vmatpush1.bf16.msra.mxu0 0
    %1522 = vmatprep.subr.bf16.mxu0 0
    %1523 = vmatpush1.bf16.msra.mxu0 0
    %1524 = vmatprep.subr.bf16.mxu0 0
    %1525 = vmatpush1.bf16.msra.mxu0 0
    %1526 = vmatprep.subr.bf16.mxu0 0
    %1527 = vmatpush1.bf16.msra.mxu0 0
    %1528 = vmatprep.subr.bf16.mxu0 0
    %1529 = vmatpush1.bf16.msra.mxu0 0
    %1530 = vmatprep.subr.bf16.mxu0 0
    %1531 = vmatpush1.bf16.msra.mxu0 0
    %1532 = vmatprep.mubr.bf16.mxu0 0
    %1533 = vmatmul.mubr.bf16.gmra.mrb[0].mxu0 %v512
    %v1534 = vpop.f32.mrb[0].mxu0
    %v1535 = vadd.f32 %v1494, %v1534
    %v1536 = vpop.f32.mrb[0].mxu0
    %v1537 = vadd.f32 %v1496, %v1536
    %v1538 = vpop.f32.mrb[0].mxu0
    %v1539 = vpop.f32.mrb[0].mxu0
    %1540 = vdwg.mxu0
    %1541 = vmatprep.subr.bf16.mxu0 %v1094
    %1542 = vmatpush1.bf16.msra.mxu0 %v1093
    %1543 = vmatprep.subr.bf16.mxu0 %v1100
    %1544 = vmatpush1.bf16.msra.mxu0 %v1099
    %1545 = vmatprep.subr.bf16.mxu0 %v1106
    %1546 = vmatpush1.bf16.msra.mxu0 %v1105
    %1547 = vmatprep.subr.bf16.mxu0 %v1112
    %1548 = vmatpush1.bf16.msra.mxu0 %v1111
    %1549 = vmatprep.subr.bf16.mxu0 %v1118
    %1550 = vmatpush1.bf16.msra.mxu0 %v1117
    %1551 = vmatprep.subr.bf16.mxu0 %v1124
    %1552 = vmatpush1.bf16.msra.mxu0 %v1123
    %1553 = vmatprep.subr.bf16.mxu0 %v1130
    %1554 = vmatpush1.bf16.msra.mxu0 %v1129
    %1555 = vmatprep.subr.bf16.mxu0 %v1136
    %1556 = vmatpush1.bf16.msra.mxu0 %v1135
    %1557 = vmatprep.subr.bf16.mxu0 %v1142
    %1558 = vmatpush1.bf16.msra.mxu0 %v1141
    %1559 = vmatprep.subr.bf16.mxu0 %v1148
    %1560 = vmatpush1.bf16.msra.mxu0 %v1147
    %1561 = vmatprep.subr.bf16.mxu0 %v1154
    %1562 = vmatpush1.bf16.msra.mxu0 %v1153
    %1563 = vmatprep.subr.bf16.mxu0 %v1160
    %1564 = vmatpush1.bf16.msra.mxu0 %v1159
    %1565 = vmatprep.subr.bf16.mxu0 %v1166
    %1566 = vmatpush1.bf16.msra.mxu0 %v1165
    %1567 = vmatprep.subr.bf16.mxu0 %v1172
    %1568 = vmatpush1.bf16.msra.mxu0 %v1171
    %1569 = vmatprep.subr.bf16.mxu0 %v1178
    %1570 = vmatpush1.bf16.msra.mxu0 %v1177
    %1571 = vmatprep.subr.bf16.mxu0 %v1184
    %1572 = vmatpush1.bf16.msra.mxu0 %v1183
    %1573 = vmatprep.mubr.bf16.mxu0 %v511
    %1574 = vmatmul.mubr.bf16.gmra.mrb[0].mxu0 %v510
    %v1575 = vpop.f32.mrb[0].mxu0
    %v1576 = vadd.f32 0.0, %v1575
    %v1577 = vpop.f32.mrb[0].mxu0
    %v1578 = vadd.f32 0.0, %v1577
    %v1579 = vpop.f32.mrb[0].mxu0
    %v1580 = vpop.f32.mrb[0].mxu0
    %1581 = vdwg.mxu0
    %1582 = vmatprep.subr.bf16.mxu0 %v1190
    %1583 = vmatpush1.bf16.msra.mxu0 %v1189
    %1584 = vmatprep.subr.bf16.mxu0 %v1196
    %1585 = vmatpush1.bf16.msra.mxu0 %v1195
    %1586 = vmatprep.subr.bf16.mxu0 %v1202
    %1587 = vmatpush1.bf16.msra.mxu0 %v1201
    %1588 = vmatprep.subr.bf16.mxu0 %v1208
    %1589 = vmatpush1.bf16.msra.mxu0 %v1207
    %1590 = vmatprep.subr.bf16.mxu0 %v1214
    %1591 = vmatpush1.bf16.msra.mxu0 %v1213
    %1592 = vmatprep.subr.bf16.mxu0 %v1220
    %1593 = vmatpush1.bf16.msra.mxu0 %v1219
    %1594 = vmatprep.subr.bf16.mxu0 %v1226
    %1595 = vmatpush1.bf16.msra.mxu0 %v1225
    %1596 = vmatprep.subr.bf16.mxu0 %v1232
    %1597 = vmatpush1.bf16.msra.mxu0 %v1231
    %1598 = vmatprep.subr.bf16.mxu0 0
    %1599 = vmatpush1.bf16.msra.mxu0 0
    %1600 = vmatprep.subr.bf16.mxu0 0
    %1601 = vmatpush1.bf16.msra.mxu0 0
    %1602 = vmatprep.subr.bf16.mxu0 0
    %1603 = vmatpush1.bf16.msra.mxu0 0
    %1604 = vmatprep.subr.bf16.mxu0 0
    %1605 = vmatpush1.bf16.msra.mxu0 0
    %1606 = vmatprep.subr.bf16.mxu0 0
    %1607 = vmatpush1.bf16.msra.mxu0 0
    %1608 = vmatprep.subr.bf16.mxu0 0
    %1609 = vmatpush1.bf16.msra.mxu0 0
    %1610 = vmatprep.subr.bf16.mxu0 0
    %1611 = vmatpush1.bf16.msra.mxu0 0
    %1612 = vmatprep.subr.bf16.mxu0 0
    %1613 = vmatpush1.bf16.msra.mxu0 0
    %1614 = vmatprep.mubr.bf16.mxu0 0
    %1615 = vmatmul.mubr.bf16.gmra.mrb[0].mxu0 %v512
    %v1616 = vpop.f32.mrb[0].mxu0
    %v1617 = vadd.f32 %v1576, %v1616
    %v1618 = vpop.f32.mrb[0].mxu0
    %v1619 = vadd.f32 %v1578, %v1618
    %v1620 = vpop.f32.mrb[0].mxu0
    %v1621 = vpop.f32.mrb[0].mxu0
    %1622 = vdwg.mxu0
    %v1623 = vmax.f32 %v1453, 0.0
    %v1624 = vmax.f32 %v1455, 0.0
    %v1625 = vmax.f32 %v1535, 0.0
    %v1626 = vmax.f32 %v1537, 0.0
    %v1627 = vmax.f32 %v1617, 0.0
    %v1628 = vmax.f32 %v1619, 0.0
    %v1629 = vpack.c.bf16 %v1623, %v1623
    %v1630 = vpack.c.bf16 %v1624, %v1624
    %v1631 = vpack.c.bf16 %v1625, %v1625
    %v1632 = vpack.c.bf16 %v1626, %v1626
    %v1633 = vpack.c.bf16 %v1627, %v1627
    %v1634 = vpack.c.bf16 %v1628, %v1628
    %v1635 = vld [vmem:[#allocation10] sm:$0xff]
    %v1636 = vld [vmem:[#allocation10 + $0x8] sm:$0xff]
    %v1637 = vld [vmem:[#allocation10 + $0x10] sm:$0xff]
    %v1638 = vld [vmem:[#allocation10 + $0x18] sm:$0xff]
    %v1639 = vld [vmem:[#allocation10 + $0x20] sm:$0xff]
    %v1640 = vld [vmem:[#allocation10 + $0x28] sm:$0xff]
    %v1641 = vld [vmem:[#allocation10 + $0x30] sm:$0xff]
    %v1642 = vld [vmem:[#allocation10 + $0x38] sm:$0xff]
    %v1643 = vld [vmem:[#allocation10 + $0x40] sm:$0xff]
    %v1644 = vld [vmem:[#allocation10 + $0x48] sm:$0xff]
    %v1645 = vld [vmem:[#allocation10 + $0x50] sm:$0xff]
    %v1646 = vld [vmem:[#allocation10 + $0x58] sm:$0xff]
    %v1647 = vld [vmem:[#allocation10 + $0x60] sm:$0xff]
    %v1648 = vld [vmem:[#allocation10 + $0x68] sm:$0xff]
    %v1649 = vld [vmem:[#allocation10 + $0x70] sm:$0xff]
    %v1650 = vld [vmem:[#allocation10 + $0x78] sm:$0xff]
    %v1651 = vld [vmem:[#allocation10 + $0x80] sm:$0xff]
    %v1652 = vld [vmem:[#allocation10 + $0x88] sm:$0xff]
    %v1653 = vld [vmem:[#allocation10 + $0x90] sm:$0xff]
    %v1654 = vld [vmem:[#allocation10 + $0x98] sm:$0xff]
    %v1655 = vld [vmem:[#allocation10 + $0xa0] sm:$0xff]
    %v1656 = vld [vmem:[#allocation10 + $0xa8] sm:$0xff]
    %v1657 = vld [vmem:[#allocation10 + $0xb0] sm:$0xff]
    %v1658 = vld [vmem:[#allocation10 + $0xb8] sm:$0xff]
    %v1659 = vld [vmem:[#allocation10 + $0xc0] sm:$0xff]
    %v1660 = vld [vmem:[#allocation10 + $0xc8] sm:$0xff]
    %v1661 = vld [vmem:[#allocation10 + $0xd0] sm:$0xff]
    %v1662 = vld [vmem:[#allocation10 + $0xd8] sm:$0xff]
    %v1663 = vld [vmem:[#allocation10 + $0xe0] sm:$0xff]
    %v1664 = vld [vmem:[#allocation10 + $0xe8] sm:$0xff]
    %v1665 = vld [vmem:[#allocation10 + $0xf0] sm:$0xff]
    %v1666 = vld [vmem:[#allocation10 + $0xf8] sm:$0xff]
    %v1667 = vld [vmem:[#allocation10 + $0x100] sm:$0xff]
    %v1668 = vld [vmem:[#allocation10 + $0x108] sm:$0xff]
    %v1669 = vld [vmem:[#allocation10 + $0x110] sm:$0xff]
    %v1670 = vld [vmem:[#allocation10 + $0x118] sm:$0xff]
    %v1671 = vld [vmem:[#allocation10 + $0x120] sm:$0xff]
    %v1672 = vld [vmem:[#allocation10 + $0x128] sm:$0xff]
    %v1673 = vld [vmem:[#allocation10 + $0x130] sm:$0xff]
    %v1674 = vld [vmem:[#allocation10 + $0x138] sm:$0xff]
    %v1675 = vld [vmem:[#allocation10 + $0x140] sm:$0xff]
    %v1676 = vld [vmem:[#allocation10 + $0x148] sm:$0xff]
    %v1677 = vld [vmem:[#allocation10 + $0x150] sm:$0xff]
    %v1678 = vld [vmem:[#allocation10 + $0x158] sm:$0xff]
    %v1679 = vld [vmem:[#allocation10 + $0x160] sm:$0xff]
    %v1680 = vld [vmem:[#allocation10 + $0x168] sm:$0xff]
    %v1681 = vld [vmem:[#allocation10 + $0x170] sm:$0xff]
    %v1682 = vld [vmem:[#allocation10 + $0x178] sm:$0xff]
    %v1683 = vld [vmem:[#allocation10 + $0x180] sm:$0xff]
    %v1684 = vld [vmem:[#allocation10 + $0x188] sm:$0xff]
    %v1685 = vld [vmem:[#allocation10 + $0x190] sm:$0xff]
    %v1686 = vld [vmem:[#allocation10 + $0x198] sm:$0xff]
    %v1687 = vld [vmem:[#allocation10 + $0x1a0] sm:$0xff]
    %v1688 = vld [vmem:[#allocation10 + $0x1a8] sm:$0xff]
    %v1689 = vld [vmem:[#allocation10 + $0x1b0] sm:$0xff]
    %v1690 = vld [vmem:[#allocation10 + $0x1b8] sm:$0xff]
    %v1691 = vld [vmem:[#allocation10 + $0x1c0] sm:$0xff]
    %v1692 = vld [vmem:[#allocation10 + $0x1c8] sm:$0xff]
    %v1693 = vld [vmem:[#allocation10 + $0x1d0] sm:$0xff]
    %v1694 = vld [vmem:[#allocation10 + $0x1d8] sm:$0xff]
    %v1695 = vld [vmem:[#allocation10 + $0x1e0] sm:$0xff]
    %v1696 = vld [vmem:[#allocation10 + $0x1e8] sm:$0xff]
    %v1697 = vld [vmem:[#allocation10 + $0x1f0] sm:$0xff]
    %v1698 = vld [vmem:[#allocation10 + $0x1f8] sm:$0xff]
    %v1699 = vld [vmem:[#allocation10 + $0x200] sm:$0xff]
    %v1700 = vld [vmem:[#allocation10 + $0x208] sm:$0xff]
    %v1701 = vld [vmem:[#allocation10 + $0x210] sm:$0xff]
    %v1702 = vld [vmem:[#allocation10 + $0x218] sm:$0xff]
    %v1703 = vld [vmem:[#allocation10 + $0x220] sm:$0xff]
    %v1704 = vld [vmem:[#allocation10 + $0x228] sm:$0xff]
    %v1705 = vld [vmem:[#allocation10 + $0x230] sm:$0xff]
    %v1706 = vld [vmem:[#allocation10 + $0x238] sm:$0xff]
    %v1707 = vld [vmem:[#allocation10 + $0x240] sm:$0xff]
    %v1708 = vld [vmem:[#allocation10 + $0x248] sm:$0xff]
    %v1709 = vld [vmem:[#allocation10 + $0x250] sm:$0xff]
    %v1710 = vld [vmem:[#allocation10 + $0x258] sm:$0xff]
    %v1711 = vld [vmem:[#allocation10 + $0x260] sm:$0xff]
    %v1712 = vld [vmem:[#allocation10 + $0x268] sm:$0xff]
    %v1713 = vld [vmem:[#allocation10 + $0x270] sm:$0xff]
    %v1714 = vld [vmem:[#allocation10 + $0x278] sm:$0xff]
    %v1715 = vld [vmem:[#allocation10 + $0x280] sm:$0xff]
    %v1716 = vld [vmem:[#allocation10 + $0x288] sm:$0xff]
    %v1717 = vld [vmem:[#allocation10 + $0x290] sm:$0xff]
    %v1718 = vld [vmem:[#allocation10 + $0x298] sm:$0xff]
    %v1719 = vld [vmem:[#allocation10 + $0x2a0] sm:$0xff]
    %v1720 = vld [vmem:[#allocation10 + $0x2a8] sm:$0xff]
    %v1721 = vld [vmem:[#allocation10 + $0x2b0] sm:$0xff]
    %v1722 = vld [vmem:[#allocation10 + $0x2b8] sm:$0xff]
    %v1723 = vld [vmem:[#allocation10 + $0x2c0] sm:$0xff]
    %v1724 = vld [vmem:[#allocation10 + $0x2c8] sm:$0xff]
    %v1725 = vld [vmem:[#allocation10 + $0x2d0] sm:$0xff]
    %v1726 = vld [vmem:[#allocation10 + $0x2d8] sm:$0xff]
    %v1727 = vld [vmem:[#allocation10 + $0x2e0] sm:$0xff]
    %v1728 = vld [vmem:[#allocation10 + $0x2e8] sm:$0xff]
    %v1729 = vld [vmem:[#allocation10 + $0x2f0] sm:$0xff]
    %v1730 = vld [vmem:[#allocation10 + $0x2f8] sm:$0xff]
    %v1827 = vunpack.c.l.b16 %v1635
    %v1828 = vunpack.c.h.b16 %v1635
    %v1829 = vunpack.c.l.b16 %v1636
    %v1830 = vunpack.c.h.b16 %v1636
    %v1831 = vunpack.c.l.b16 %v1637
    %v1832 = vunpack.c.h.b16 %v1637
    %v1833 = vunpack.c.l.b16 %v1638
    %v1834 = vunpack.c.h.b16 %v1638
    %v1835 = vunpack.c.l.b16 %v1639
    %v1836 = vunpack.c.h.b16 %v1639
    %v1837 = vunpack.c.l.b16 %v1640
    %v1838 = vunpack.c.h.b16 %v1640
    %v1839 = vunpack.c.l.b16 %v1641
    %v1840 = vunpack.c.h.b16 %v1641
    %v1841 = vunpack.c.l.b16 %v1642
    %v1842 = vunpack.c.h.b16 %v1642
    %v1843 = vunpack.c.l.b16 %v1643
    %v1844 = vunpack.c.h.b16 %v1643
    %v1845 = vunpack.c.l.b16 %v1644
    %v1846 = vunpack.c.h.b16 %v1644
    %v1847 = vunpack.c.l.b16 %v1645
    %v1848 = vunpack.c.h.b16 %v1645
    %v1849 = vunpack.c.l.b16 %v1646
    %v1850 = vunpack.c.h.b16 %v1646
    %v1851 = vunpack.c.l.b16 %v1647
    %v1852 = vunpack.c.h.b16 %v1647
    %v1853 = vunpack.c.l.b16 %v1648
    %v1854 = vunpack.c.h.b16 %v1648
    %v1855 = vunpack.c.l.b16 %v1649
    %v1856 = vunpack.c.h.b16 %v1649
    %v1857 = vunpack.c.l.b16 %v1650
    %v1858 = vunpack.c.h.b16 %v1650
    %v1859 = vunpack.c.l.b16 %v1651
    %v1860 = vunpack.c.h.b16 %v1651
    %v1861 = vunpack.c.l.b16 %v1652
    %v1862 = vunpack.c.h.b16 %v1652
    %v1863 = vunpack.c.l.b16 %v1653
    %v1864 = vunpack.c.h.b16 %v1653
    %v1865 = vunpack.c.l.b16 %v1654
    %v1866 = vunpack.c.h.b16 %v1654
    %v1867 = vunpack.c.l.b16 %v1655
    %v1868 = vunpack.c.h.b16 %v1655
    %v1869 = vunpack.c.l.b16 %v1656
    %v1870 = vunpack.c.h.b16 %v1656
    %v1871 = vunpack.c.l.b16 %v1657
    %v1872 = vunpack.c.h.b16 %v1657
    %v1873 = vunpack.c.l.b16 %v1658
    %v1874 = vunpack.c.h.b16 %v1658
    %v1875 = vunpack.c.l.b16 %v1659
    %v1876 = vunpack.c.h.b16 %v1659
    %v1877 = vunpack.c.l.b16 %v1660
    %v1878 = vunpack.c.h.b16 %v1660
    %v1879 = vunpack.c.l.b16 %v1661
    %v1880 = vunpack.c.h.b16 %v1661
    %v1881 = vunpack.c.l.b16 %v1662
    %v1882 = vunpack.c.h.b16 %v1662
    %v1883 = vunpack.c.l.b16 %v1663
    %v1884 = vunpack.c.h.b16 %v1663
    %v1885 = vunpack.c.l.b16 %v1664
    %v1886 = vunpack.c.h.b16 %v1664
    %v1887 = vunpack.c.l.b16 %v1665
    %v1888 = vunpack.c.h.b16 %v1665
    %v1889 = vunpack.c.l.b16 %v1666
    %v1890 = vunpack.c.h.b16 %v1666
    %v1891 = vunpack.c.l.b16 %v1667
    %v1892 = vunpack.c.h.b16 %v1667
    %v1893 = vunpack.c.l.b16 %v1668
    %v1894 = vunpack.c.h.b16 %v1668
    %v1895 = vunpack.c.l.b16 %v1669
    %v1896 = vunpack.c.h.b16 %v1669
    %v1897 = vunpack.c.l.b16 %v1670
    %v1898 = vunpack.c.h.b16 %v1670
    %v1899 = vunpack.c.l.b16 %v1671
    %v1900 = vunpack.c.h.b16 %v1671
    %v1901 = vunpack.c.l.b16 %v1672
    %v1902 = vunpack.c.h.b16 %v1672
    %v1903 = vunpack.c.l.b16 %v1673
    %v1904 = vunpack.c.h.b16 %v1673
    %v1905 = vunpack.c.l.b16 %v1674
    %v1906 = vunpack.c.h.b16 %v1674
    %v1907 = vunpack.c.l.b16 %v1675
    %v1908 = vunpack.c.h.b16 %v1675
    %v1909 = vunpack.c.l.b16 %v1676
    %v1910 = vunpack.c.h.b16 %v1676
    %v1911 = vunpack.c.l.b16 %v1677
    %v1912 = vunpack.c.h.b16 %v1677
    %v1913 = vunpack.c.l.b16 %v1678
    %v1914 = vunpack.c.h.b16 %v1678
    %v1915 = vunpack.c.l.b16 %v1679
    %v1916 = vunpack.c.h.b16 %v1679
    %v1917 = vunpack.c.l.b16 %v1680
    %v1918 = vunpack.c.h.b16 %v1680
    %v1919 = vunpack.c.l.b16 %v1681
    %v1920 = vunpack.c.h.b16 %v1681
    %v1921 = vunpack.c.l.b16 %v1682
    %v1922 = vunpack.c.h.b16 %v1682
    %v1923 = vunpack.c.l.b16 %v1683
    %v1924 = vunpack.c.h.b16 %v1683
    %v1925 = vunpack.c.l.b16 %v1684
    %v1926 = vunpack.c.h.b16 %v1684
    %v1927 = vunpack.c.l.b16 %v1685
    %v1928 = vunpack.c.h.b16 %v1685
    %v1929 = vunpack.c.l.b16 %v1686
    %v1930 = vunpack.c.h.b16 %v1686
    %v1931 = vunpack.c.l.b16 %v1687
    %v1932 = vunpack.c.h.b16 %v1687
    %v1933 = vunpack.c.l.b16 %v1688
    %v1934 = vunpack.c.h.b16 %v1688
    %v1935 = vunpack.c.l.b16 %v1689
    %v1936 = vunpack.c.h.b16 %v1689
    %v1937 = vunpack.c.l.b16 %v1690
    %v1938 = vunpack.c.h.b16 %v1690
    %v1939 = vunpack.c.l.b16 %v1691
    %v1940 = vunpack.c.h.b16 %v1691
    %v1941 = vunpack.c.l.b16 %v1692
    %v1942 = vunpack.c.h.b16 %v1692
    %v1943 = vunpack.c.l.b16 %v1693
    %v1944 = vunpack.c.h.b16 %v1693
    %v1945 = vunpack.c.l.b16 %v1694
    %v1946 = vunpack.c.h.b16 %v1694
    %v1947 = vunpack.c.l.b16 %v1695
    %v1948 = vunpack.c.h.b16 %v1695
    %v1949 = vunpack.c.l.b16 %v1696
    %v1950 = vunpack.c.h.b16 %v1696
    %v1951 = vunpack.c.l.b16 %v1697
    %v1952 = vunpack.c.h.b16 %v1697
    %v1953 = vunpack.c.l.b16 %v1698
    %v1954 = vunpack.c.h.b16 %v1698
    %v1955 = vunpack.c.l.b16 %v1699
    %v1956 = vunpack.c.h.b16 %v1699
    %v1957 = vunpack.c.l.b16 %v1700
    %v1958 = vunpack.c.h.b16 %v1700
    %v1959 = vunpack.c.l.b16 %v1701
    %v1960 = vunpack.c.h.b16 %v1701
    %v1961 = vunpack.c.l.b16 %v1702
    %v1962 = vunpack.c.h.b16 %v1702
    %v1963 = vunpack.c.l.b16 %v1703
    %v1964 = vunpack.c.h.b16 %v1703
    %v1965 = vunpack.c.l.b16 %v1704
    %v1966 = vunpack.c.h.b16 %v1704
    %v1967 = vunpack.c.l.b16 %v1705
    %v1968 = vunpack.c.h.b16 %v1705
    %v1969 = vunpack.c.l.b16 %v1706
    %v1970 = vunpack.c.h.b16 %v1706
    %v1971 = vunpack.c.l.b16 %v1707
    %v1972 = vunpack.c.h.b16 %v1707
    %v1973 = vunpack.c.l.b16 %v1708
    %v1974 = vunpack.c.h.b16 %v1708
    %v1975 = vunpack.c.l.b16 %v1709
    %v1976 = vunpack.c.h.b16 %v1709
    %v1977 = vunpack.c.l.b16 %v1710
    %v1978 = vunpack.c.h.b16 %v1710
    %v1979 = vunpack.c.l.b16 %v1711
    %v1980 = vunpack.c.h.b16 %v1711
    %v1981 = vunpack.c.l.b16 %v1712
    %v1982 = vunpack.c.h.b16 %v1712
    %v1983 = vunpack.c.l.b16 %v1713
    %v1984 = vunpack.c.h.b16 %v1713
    %v1985 = vunpack.c.l.b16 %v1714
    %v1986 = vunpack.c.h.b16 %v1714
    %v1987 = vunpack.c.l.b16 %v1715
    %v1988 = vunpack.c.h.b16 %v1715
    %v1989 = vunpack.c.l.b16 %v1716
    %v1990 = vunpack.c.h.b16 %v1716
    %v1991 = vunpack.c.l.b16 %v1717
    %v1992 = vunpack.c.h.b16 %v1717
    %v1993 = vunpack.c.l.b16 %v1718
    %v1994 = vunpack.c.h.b16 %v1718
    %v1995 = vunpack.c.l.b16 %v1719
    %v1996 = vunpack.c.h.b16 %v1719
    %v1997 = vunpack.c.l.b16 %v1720
    %v1998 = vunpack.c.h.b16 %v1720
    %v1999 = vunpack.c.l.b16 %v1721
    %v2000 = vunpack.c.h.b16 %v1721
    %v2001 = vunpack.c.l.b16 %v1722
    %v2002 = vunpack.c.h.b16 %v1722
    %v2003 = vunpack.c.l.b16 %v1723
    %v2004 = vunpack.c.h.b16 %v1723
    %v2005 = vunpack.c.l.b16 %v1724
    %v2006 = vunpack.c.h.b16 %v1724
    %v2007 = vunpack.c.l.b16 %v1725
    %v2008 = vunpack.c.h.b16 %v1725
    %v2009 = vunpack.c.l.b16 %v1726
    %v2010 = vunpack.c.h.b16 %v1726
    %v2011 = vunpack.c.l.b16 %v1727
    %v2012 = vunpack.c.h.b16 %v1727
    %v2013 = vunpack.c.l.b16 %v1728
    %v2014 = vunpack.c.h.b16 %v1728
    %v2015 = vunpack.c.l.b16 %v1729
    %v2016 = vunpack.c.h.b16 %v1729
    %v2017 = vunpack.c.l.b16 %v1730
    %v2018 = vunpack.c.h.b16 %v1730
    %v2019 = vpack.c.b16 %v1829, %v1827
    %v2020 = vpack.c.b16 %v1830, %v1828
    %v2021 = vpack.c.b16 %v1833, %v1831
    %v2022 = vpack.c.b16 %v1834, %v1832
    %v2023 = vpack.c.b16 %v1837, %v1835
    %v2024 = vpack.c.b16 %v1838, %v1836
    %v2025 = vpack.c.b16 %v1841, %v1839
    %v2026 = vpack.c.b16 %v1842, %v1840
    %v2027 = vpack.c.b16 %v1845, %v1843
    %v2028 = vpack.c.b16 %v1846, %v1844
    %v2029 = vpack.c.b16 %v1849, %v1847
    %v2030 = vpack.c.b16 %v1850, %v1848
    %v2031 = vpack.c.b16 %v1853, %v1851
    %v2032 = vpack.c.b16 %v1854, %v1852
    %v2033 = vpack.c.b16 %v1857, %v1855
    %v2034 = vpack.c.b16 %v1858, %v1856
    %v2035 = vpack.c.b16 %v1861, %v1859
    %v2036 = vpack.c.b16 %v1862, %v1860
    %v2037 = vpack.c.b16 %v1865, %v1863
    %v2038 = vpack.c.b16 %v1866, %v1864
    %v2039 = vpack.c.b16 %v1869, %v1867
    %v2040 = vpack.c.b16 %v1870, %v1868
    %v2041 = vpack.c.b16 %v1873, %v1871
    %v2042 = vpack.c.b16 %v1874, %v1872
    %v2043 = vpack.c.b16 %v1877, %v1875
    %v2044 = vpack.c.b16 %v1878, %v1876
    %v2045 = vpack.c.b16 %v1881, %v1879
    %v2046 = vpack.c.b16 %v1882, %v1880
    %v2047 = vpack.c.b16 %v1885, %v1883
    %v2048 = vpack.c.b16 %v1886, %v1884
    %v2049 = vpack.c.b16 %v1889, %v1887
    %v2050 = vpack.c.b16 %v1890, %v1888
    %v2051 = vpack.c.b16 %v1893, %v1891
    %v2052 = vpack.c.b16 %v1894, %v1892
    %v2053 = vpack.c.b16 %v1897, %v1895
    %v2054 = vpack.c.b16 %v1898, %v1896
    %v2055 = vpack.c.b16 %v1901, %v1899
    %v2056 = vpack.c.b16 %v1902, %v1900
    %v2057 = vpack.c.b16 %v1905, %v1903
    %v2058 = vpack.c.b16 %v1906, %v1904
    %v2059 = vpack.c.b16 %v1909, %v1907
    %v2060 = vpack.c.b16 %v1910, %v1908
    %v2061 = vpack.c.b16 %v1913, %v1911
    %v2062 = vpack.c.b16 %v1914, %v1912
    %v2063 = vpack.c.b16 %v1917, %v1915
    %v2064 = vpack.c.b16 %v1918, %v1916
    %v2065 = vpack.c.b16 %v1921, %v1919
    %v2066 = vpack.c.b16 %v1922, %v1920
    %v2067 = vpack.c.b16 %v1925, %v1923
    %v2068 = vpack.c.b16 %v1926, %v1924
    %v2069 = vpack.c.b16 %v1929, %v1927
    %v2070 = vpack.c.b16 %v1930, %v1928
    %v2071 = vpack.c.b16 %v1933, %v1931
    %v2072 = vpack.c.b16 %v1934, %v1932
    %v2073 = vpack.c.b16 %v1937, %v1935
    %v2074 = vpack.c.b16 %v1938, %v1936
    %v2075 = vpack.c.b16 %v1941, %v1939
    %v2076 = vpack.c.b16 %v1942, %v1940
    %v2077 = vpack.c.b16 %v1945, %v1943
    %v2078 = vpack.c.b16 %v1946, %v1944
    %v2079 = vpack.c.b16 %v1949, %v1947
    %v2080 = vpack.c.b16 %v1950, %v1948
    %v2081 = vpack.c.b16 %v1953, %v1951
    %v2082 = vpack.c.b16 %v1954, %v1952
    %v2083 = vpack.c.b16 %v1957, %v1955
    %v2084 = vpack.c.b16 %v1958, %v1956
    %v2085 = vpack.c.b16 %v1961, %v1959
    %v2086 = vpack.c.b16 %v1962, %v1960
    %v2087 = vpack.c.b16 %v1965, %v1963
    %v2088 = vpack.c.b16 %v1966, %v1964
    %v2089 = vpack.c.b16 %v1969, %v1967
    %v2090 = vpack.c.b16 %v1970, %v1968
    %v2091 = vpack.c.b16 %v1973, %v1971
    %v2092 = vpack.c.b16 %v1974, %v1972
    %v2093 = vpack.c.b16 %v1977, %v1975
    %v2094 = vpack.c.b16 %v1978, %v1976
    %v2095 = vpack.c.b16 %v1981, %v1979
    %v2096 = vpack.c.b16 %v1982, %v1980
    %v2097 = vpack.c.b16 %v1985, %v1983
    %v2098 = vpack.c.b16 %v1986, %v1984
    %v2099 = vpack.c.b16 %v1989, %v1987
    %v2100 = vpack.c.b16 %v1990, %v1988
    %v2101 = vpack.c.b16 %v1993, %v1991
    %v2102 = vpack.c.b16 %v1994, %v1992
    %v2103 = vpack.c.b16 %v1997, %v1995
    %v2104 = vpack.c.b16 %v1998, %v1996
    %v2105 = vpack.c.b16 %v2001, %v1999
    %v2106 = vpack.c.b16 %v2002, %v2000
    %v2107 = vpack.c.b16 %v2005, %v2003
    %v2108 = vpack.c.b16 %v2006, %v2004
    %v2109 = vpack.c.b16 %v2009, %v2007
    %v2110 = vpack.c.b16 %v2010, %v2008
    %v2111 = vpack.c.b16 %v2013, %v2011
    %v2112 = vpack.c.b16 %v2014, %v2012
    %v2113 = vpack.c.b16 %v2017, %v2015
    %v2114 = vpack.c.b16 %v2018, %v2016
    %2211 = vmatprep.subr.bf16.mxu0 %v2020
    %2212 = vmatpush1.bf16.msra.mxu0 %v2019
    %2213 = vmatprep.subr.bf16.mxu0 %v2022
    %2214 = vmatpush1.bf16.msra.mxu0 %v2021
    %2215 = vmatprep.subr.bf16.mxu0 %v2024
    %2216 = vmatpush1.bf16.msra.mxu0 %v2023
    %2217 = vmatprep.subr.bf16.mxu0 %v2026
    %2218 = vmatpush1.bf16.msra.mxu0 %v2025
    %2219 = vmatprep.subr.bf16.mxu0 %v2028
    %2220 = vmatpush1.bf16.msra.mxu0 %v2027
    %2221 = vmatprep.subr.bf16.mxu0 %v2030
    %2222 = vmatpush1.bf16.msra.mxu0 %v2029
    %2223 = vmatprep.subr.bf16.mxu0 %v2032
    %2224 = vmatpush1.bf16.msra.mxu0 %v2031
    %2225 = vmatprep.subr.bf16.mxu0 %v2034
    %2226 = vmatpush1.bf16.msra.mxu0 %v2033
    %2227 = vmatprep.subr.bf16.mxu0 %v2036
    %2228 = vmatpush1.bf16.msra.mxu0 %v2035
    %2229 = vmatprep.subr.bf16.mxu0 %v2038
    %2230 = vmatpush1.bf16.msra.mxu0 %v2037
    %2231 = vmatprep.subr.bf16.mxu0 %v2040
    %2232 = vmatpush1.bf16.msra.mxu0 %v2039
    %2233 = vmatprep.subr.bf16.mxu0 %v2042
    %2234 = vmatpush1.bf16.msra.mxu0 %v2041
    %2235 = vmatprep.subr.bf16.mxu0 %v2044
    %2236 = vmatpush1.bf16.msra.mxu0 %v2043
    %2237 = vmatprep.subr.bf16.mxu0 %v2046
    %2238 = vmatpush1.bf16.msra.mxu0 %v2045
    %2239 = vmatprep.subr.bf16.mxu0 %v2048
    %2240 = vmatpush1.bf16.msra.mxu0 %v2047
    %2241 = vmatprep.subr.bf16.mxu0 %v2050
    %2242 = vmatpush1.bf16.msra.mxu0 %v2049
    %2243 = vmatprep.mubr.bf16.mxu0 %v1630
    %2244 = vmatmul.mubr.bf16.gmra.mrb[0].mxu0 %v1629
    %v2245 = vpop.f32.mrb[0].mxu0
    %v2246 = vadd.f32 0.0, %v2245
    %v2247 = vpop.f32.mrb[0].mxu0
    %v2248 = vadd.f32 0.0, %v2247
    %v2249 = vpop.f32.mrb[0].mxu0
    %v2250 = vpop.f32.mrb[0].mxu0
    %2251 = vdwg.mxu0
    %2252 = vmatprep.subr.bf16.mxu0 %v2052
    %2253 = vmatpush1.bf16.msra.mxu0 %v2051
    %2254 = vmatprep.subr.bf16.mxu0 %v2054
    %2255 = vmatpush1.bf16.msra.mxu0 %v2053
    %2256 = vmatprep.subr.bf16.mxu0 %v2056
    %2257 = vmatpush1.bf16.msra.mxu0 %v2055
    %2258 = vmatprep.subr.bf16.mxu0 %v2058
    %2259 = vmatpush1.bf16.msra.mxu0 %v2057
    %2260 = vmatprep.subr.bf16.mxu0 %v2060
    %2261 = vmatpush1.bf16.msra.mxu0 %v2059
    %2262 = vmatprep.subr.bf16.mxu0 %v2062
    %2263 = vmatpush1.bf16.msra.mxu0 %v2061
    %2264 = vmatprep.subr.bf16.mxu0 %v2064
    %2265 = vmatpush1.bf16.msra.mxu0 %v2063
    %2266 = vmatprep.subr.bf16.mxu0 %v2066
    %2267 = vmatpush1.bf16.msra.mxu0 %v2065
    %2268 = vmatprep.subr.bf16.mxu0 %v2068
    %2269 = vmatpush1.bf16.msra.mxu0 %v2067
    %2270 = vmatprep.subr.bf16.mxu0 %v2070
    %2271 = vmatpush1.bf16.msra.mxu0 %v2069
    %2272 = vmatprep.subr.bf16.mxu0 %v2072
    %2273 = vmatpush1.bf16.msra.mxu0 %v2071
    %2274 = vmatprep.subr.bf16.mxu0 %v2074
    %2275 = vmatpush1.bf16.msra.mxu0 %v2073
    %2276 = vmatprep.subr.bf16.mxu0 %v2076
    %2277 = vmatpush1.bf16.msra.mxu0 %v2075
    %2278 = vmatprep.subr.bf16.mxu0 %v2078
    %2279 = vmatpush1.bf16.msra.mxu0 %v2077
    %2280 = vmatprep.subr.bf16.mxu0 %v2080
    %2281 = vmatpush1.bf16.msra.mxu0 %v2079
    %2282 = vmatprep.subr.bf16.mxu0 %v2082
    %2283 = vmatpush1.bf16.msra.mxu0 %v2081
    %2284 = vmatprep.mubr.bf16.mxu0 %v1632
    %2285 = vmatmul.mubr.bf16.gmra.mrb[0].mxu0 %v1631
    %v2286 = vpop.f32.mrb[0].mxu0
    %v2287 = vadd.f32 %v2246, %v2286
    %v2288 = vpop.f32.mrb[0].mxu0
    %v2289 = vadd.f32 %v2248, %v2288
    %v2290 = vpop.f32.mrb[0].mxu0
    %v2291 = vpop.f32.mrb[0].mxu0
    %2292 = vdwg.mxu0
    %2293 = vmatprep.subr.bf16.mxu0 %v2084
    %2294 = vmatpush1.bf16.msra.mxu0 %v2083
    %2295 = vmatprep.subr.bf16.mxu0 %v2086
    %2296 = vmatpush1.bf16.msra.mxu0 %v2085
    %2297 = vmatprep.subr.bf16.mxu0 %v2088
    %2298 = vmatpush1.bf16.msra.mxu0 %v2087
    %2299 = vmatprep.subr.bf16.mxu0 %v2090
    %2300 = vmatpush1.bf16.msra.mxu0 %v2089
    %2301 = vmatprep.subr.bf16.mxu0 %v2092
    %2302 = vmatpush1.bf16.msra.mxu0 %v2091
    %2303 = vmatprep.subr.bf16.mxu0 %v2094
    %2304 = vmatpush1.bf16.msra.mxu0 %v2093
    %2305 = vmatprep.subr.bf16.mxu0 %v2096
    %2306 = vmatpush1.bf16.msra.mxu0 %v2095
    %2307 = vmatprep.subr.bf16.mxu0 %v2098
    %2308 = vmatpush1.bf16.msra.mxu0 %v2097
    %2309 = vmatprep.subr.bf16.mxu0 %v2100
    %2310 = vmatpush1.bf16.msra.mxu0 %v2099
    %2311 = vmatprep.subr.bf16.mxu0 %v2102
    %2312 = vmatpush1.bf16.msra.mxu0 %v2101
    %2313 = vmatprep.subr.bf16.mxu0 %v2104
    %2314 = vmatpush1.bf16.msra.mxu0 %v2103
    %2315 = vmatprep.subr.bf16.mxu0 %v2106
    %2316 = vmatpush1.bf16.msra.mxu0 %v2105
    %2317 = vmatprep.subr.bf16.mxu0 %v2108
    %2318 = vmatpush1.bf16.msra.mxu0 %v2107
    %2319 = vmatprep.subr.bf16.mxu0 %v2110
    %2320 = vmatpush1.bf16.msra.mxu0 %v2109
    %2321 = vmatprep.subr.bf16.mxu0 %v2112
    %2322 = vmatpush1.bf16.msra.mxu0 %v2111
    %2323 = vmatprep.subr.bf16.mxu0 %v2114
    %2324 = vmatpush1.bf16.msra.mxu0 %v2113
    %2325 = vmatprep.mubr.bf16.mxu0 %v1634
    %2326 = vmatmul.mubr.bf16.gmra.mrb[0].mxu0 %v1633
    %v2327 = vpop.f32.mrb[0].mxu0
    %v2328 = vadd.f32 %v2287, %v2327
    %v2329 = vpop.f32.mrb[0].mxu0
    %v2330 = vadd.f32 %v2289, %v2329
    %v2331 = vpop.f32.mrb[0].mxu0
    %v2332 = vpop.f32.mrb[0].mxu0
    %2333 = vdwg.mxu0
    %v2334 = vmax.f32 %v2328, 0.0
    %v2335 = vmax.f32 %v2330, 0.0
    %v2336 = vpack.c.bf16 %v2334, %v2334
    %v2337 = vpack.c.bf16 %v2335, %v2335
    %v2338 = vld [vmem:[#allocation11] sm:$0xf]
    %v2339 = vld [vmem:[#allocation11 + $0x4] sm:$0xf]
    %v2340 = vld [vmem:[#allocation11 + $0x8] sm:$0xf]
    %v2341 = vld [vmem:[#allocation11 + $0xc] sm:$0xf]
    %v2342 = vld [vmem:[#allocation11 + $0x10] sm:$0xf]
    %v2343 = vld [vmem:[#allocation11 + $0x14] sm:$0xf]
    %v2344 = vld [vmem:[#allocation11 + $0x18] sm:$0xf]
    %v2345 = vld [vmem:[#allocation11 + $0x1c] sm:$0xf]
    %v2346 = vld [vmem:[#allocation11 + $0x20] sm:$0xf]
    %v2347 = vld [vmem:[#allocation11 + $0x24] sm:$0xf]
    %v2348 = vld [vmem:[#allocation11 + $0x28] sm:$0xf]
    %v2349 = vld [vmem:[#allocation11 + $0x2c] sm:$0xf]
    %v2350 = vld [vmem:[#allocation11 + $0x30] sm:$0xf]
    %v2351 = vld [vmem:[#allocation11 + $0x34] sm:$0xf]
    %v2352 = vld [vmem:[#allocation11 + $0x38] sm:$0xf]
    %v2353 = vld [vmem:[#allocation11 + $0x3c] sm:$0xf]
    %v2354 = vld [vmem:[#allocation11 + $0x40] sm:$0xf]
    %v2355 = vld [vmem:[#allocation11 + $0x44] sm:$0xf]
    %v2356 = vld [vmem:[#allocation11 + $0x48] sm:$0xf]
    %v2357 = vld [vmem:[#allocation11 + $0x4c] sm:$0xf]
    %v2358 = vld [vmem:[#allocation11 + $0x50] sm:$0xf]
    %v2359 = vld [vmem:[#allocation11 + $0x54] sm:$0xf]
    %v2360 = vld [vmem:[#allocation11 + $0x58] sm:$0xf]
    %v2361 = vld [vmem:[#allocation11 + $0x5c] sm:$0xf]
    %v2362 = vld [vmem:[#allocation11 + $0x60] sm:$0xf]
    %v2363 = vld [vmem:[#allocation11 + $0x64] sm:$0xf]
    %v2364 = vld [vmem:[#allocation11 + $0x68] sm:$0xf]
    %v2365 = vld [vmem:[#allocation11 + $0x6c] sm:$0xf]
    %v2366 = vld [vmem:[#allocation11 + $0x70] sm:$0xf]
    %v2367 = vld [vmem:[#allocation11 + $0x74] sm:$0xf]
    %v2368 = vld [vmem:[#allocation11 + $0x78] sm:$0xf]
    %v2369 = vld [vmem:[#allocation11 + $0x7c] sm:$0xf]
    %v2402 = vunpack.c.l.b16 %v2338
    %v2403 = vunpack.c.l.b16 %v2339
    %v2404 = vunpack.c.l.b16 %v2340
    %v2405 = vunpack.c.l.b16 %v2341
    %v2406 = vunpack.c.l.b16 %v2342
    %v2407 = vunpack.c.l.b16 %v2343
    %v2408 = vunpack.c.l.b16 %v2344
    %v2409 = vunpack.c.l.b16 %v2345
    %v2410 = vunpack.c.l.b16 %v2346
    %v2411 = vunpack.c.l.b16 %v2347
    %v2412 = vunpack.c.l.b16 %v2348
    %v2413 = vunpack.c.l.b16 %v2349
    %v2414 = vunpack.c.l.b16 %v2350
    %v2415 = vunpack.c.l.b16 %v2351
    %v2416 = vunpack.c.l.b16 %v2352
    %v2417 = vunpack.c.l.b16 %v2353
    %v2418 = vunpack.c.l.b16 %v2354
    %v2419 = vunpack.c.l.b16 %v2355
    %v2420 = vunpack.c.l.b16 %v2356
    %v2421 = vunpack.c.l.b16 %v2357
    %v2422 = vunpack.c.l.b16 %v2358
    %v2423 = vunpack.c.l.b16 %v2359
    %v2424 = vunpack.c.l.b16 %v2360
    %v2425 = vunpack.c.l.b16 %v2361
    %v2426 = vunpack.c.l.b16 %v2362
    %v2427 = vunpack.c.l.b16 %v2363
    %v2428 = vunpack.c.l.b16 %v2364
    %v2429 = vunpack.c.l.b16 %v2365
    %v2430 = vunpack.c.l.b16 %v2366
    %v2431 = vunpack.c.l.b16 %v2367
    %v2432 = vunpack.c.l.b16 %v2368
    %v2433 = vunpack.c.l.b16 %v2369
    %v2434 = vpack.c.b16 %v2403, %v2402
    %v2435 = vpack.c.b16 %v2405, %v2404
    %v2436 = vpack.c.b16 %v2407, %v2406
    %v2437 = vpack.c.b16 %v2409, %v2408
    %v2438 = vpack.c.b16 %v2411, %v2410
    %v2439 = vpack.c.b16 %v2413, %v2412
    %v2440 = vpack.c.b16 %v2415, %v2414
    %v2441 = vpack.c.b16 %v2417, %v2416
    %v2442 = vpack.c.b16 %v2419, %v2418
    %v2443 = vpack.c.b16 %v2421, %v2420
    %v2444 = vpack.c.b16 %v2423, %v2422
    %v2445 = vpack.c.b16 %v2425, %v2424
    %v2446 = vpack.c.b16 %v2427, %v2426
    %v2447 = vpack.c.b16 %v2429, %v2428
    %v2448 = vpack.c.b16 %v2431, %v2430
    %v2449 = vpack.c.b16 %v2433, %v2432
    %2466 = vmatprep.subr.bf16.mxu0 0
    %2467 = vmatpush1.bf16.msra.mxu0 %v2434
    %2468 = vmatprep.subr.bf16.mxu0 0
    %2469 = vmatpush1.bf16.msra.mxu0 %v2435
    %2470 = vmatprep.subr.bf16.mxu0 0
    %2471 = vmatpush1.bf16.msra.mxu0 %v2436
    %2472 = vmatprep.subr.bf16.mxu0 0
    %2473 = vmatpush1.bf16.msra.mxu0 %v2437
    %2474 = vmatprep.subr.bf16.mxu0 0
    %2475 = vmatpush1.bf16.msra.mxu0 %v2438
    %2476 = vmatprep.subr.bf16.mxu0 0
    %2477 = vmatpush1.bf16.msra.mxu0 %v2439
    %2478 = vmatprep.subr.bf16.mxu0 0
    %2479 = vmatpush1.bf16.msra.mxu0 %v2440
    %2480 = vmatprep.subr.bf16.mxu0 0
    %2481 = vmatpush1.bf16.msra.mxu0 %v2441
    %2482 = vmatprep.subr.bf16.mxu0 0
    %2483 = vmatpush1.bf16.msra.mxu0 %v2442
    %2484 = vmatprep.subr.bf16.mxu0 0
    %2485 = vmatpush1.bf16.msra.mxu0 %v2443
    %2486 = vmatprep.subr.bf16.mxu0 0
    %2487 = vmatpush1.bf16.msra.mxu0 %v2444
    %2488 = vmatprep.subr.bf16.mxu0 0
    %2489 = vmatpush1.bf16.msra.mxu0 %v2445
    %2490 = vmatprep.subr.bf16.mxu0 0
    %2491 = vmatpush1.bf16.msra.mxu0 %v2446
    %2492 = vmatprep.subr.bf16.mxu0 0
    %2493 = vmatpush1.bf16.msra.mxu0 %v2447
    %2494 = vmatprep.subr.bf16.mxu0 0
    %2495 = vmatpush1.bf16.msra.mxu0 %v2448
    %2496 = vmatprep.subr.bf16.mxu0 0
    %2497 = vmatpush1.bf16.msra.mxu0 %v2449
    %2498 = vmatprep.mubr.bf16.mxu0 %v2337
    %2499 = vmatmul.mubr.bf16.gmra.mrb[0].mxu0 %v2336
    %v2500 = vpop.f32.mrb[0].mxu0
    %v2501 = vadd.f32 0.0, %v2500
    %v2502 = vpop.f32.mrb[0].mxu0
    %v2503 = vpop.f32.mrb[0].mxu0
    %v2504 = vpop.f32.mrb[0].mxu0
    %2505 = vdwg.mxu0
    %v2506 = vmax.f32 %v2501, 0.0
    %v2507 = vpack.c.bf16 %v2506, %v2506
    %v2508 = vld [vmem:[#allocation13] sm:$0xf]
    %v2509 = vld [vmem:[#allocation13 + $0x4] sm:$0xf]
    %v2510 = vld [vmem:[#allocation13 + $0x8] sm:$0xf]
    %v2511 = vld [vmem:[#allocation13 + $0xc] sm:$0xf]
    %v2512 = vld [vmem:[#allocation13 + $0x10] sm:$0xf]
    %v2513 = vld [vmem:[#allocation13 + $0x14] sm:$0xf]
    %v2514 = vld [vmem:[#allocation13 + $0x18] sm:$0xf]
    %v2515 = vld [vmem:[#allocation13 + $0x1c] sm:$0xf]
    %v2516 = vld [vmem:[#allocation13 + $0x20] sm:$0xf]
    %v2517 = vld [vmem:[#allocation13 + $0x24] sm:$0xf]
    %v2518 = vld [vmem:[#allocation13 + $0x28] sm:$0xf]
    %v2519 = vld [vmem:[#allocation13 + $0x2c] sm:$0xf]
    %v2520 = vld [vmem:[#allocation13 + $0x30] sm:$0xf]
    %v2521 = vld [vmem:[#allocation13 + $0x34] sm:$0xf]
    %v2522 = vld [vmem:[#allocation13 + $0x38] sm:$0xf]
    %v2523 = vld [vmem:[#allocation13 + $0x3c] sm:$0xf]
    %v2540 = vunpack.c.l.b16 %v2508
    %v2541 = vunpack.c.l.b16 %v2509
    %v2542 = vunpack.c.l.b16 %v2510
    %v2543 = vunpack.c.l.b16 %v2511
    %v2544 = vunpack.c.l.b16 %v2512
    %v2545 = vunpack.c.l.b16 %v2513
    %v2546 = vunpack.c.l.b16 %v2514
    %v2547 = vunpack.c.l.b16 %v2515
    %v2548 = vunpack.c.l.b16 %v2516
    %v2549 = vunpack.c.l.b16 %v2517
    %v2550 = vunpack.c.l.b16 %v2518
    %v2551 = vunpack.c.l.b16 %v2519
    %v2552 = vunpack.c.l.b16 %v2520
    %v2553 = vunpack.c.l.b16 %v2521
    %v2554 = vunpack.c.l.b16 %v2522
    %v2555 = vunpack.c.l.b16 %v2523
    %v2556 = vpack.c.b16 %v2541, %v2540
    %v2557 = vpack.c.b16 %v2543, %v2542
    %v2558 = vpack.c.b16 %v2545, %v2544
    %v2559 = vpack.c.b16 %v2547, %v2546
    %v2560 = vpack.c.b16 %v2549, %v2548
    %v2561 = vpack.c.b16 %v2551, %v2550
    %v2562 = vpack.c.b16 %v2553, %v2552
    %v2563 = vpack.c.b16 %v2555, %v2554
    %2572 = vmatprep.subr.bf16.mxu0 0
    %2573 = vmatpush1.bf16.msra.mxu0 %v2556
    %2574 = vmatprep.subr.bf16.mxu0 0
    %2575 = vmatpush1.bf16.msra.mxu0 %v2557
    %2576 = vmatprep.subr.bf16.mxu0 0
    %2577 = vmatpush1.bf16.msra.mxu0 %v2558
    %2578 = vmatprep.subr.bf16.mxu0 0
    %2579 = vmatpush1.bf16.msra.mxu0 %v2559
    %2580 = vmatprep.subr.bf16.mxu0 0
    %2581 = vmatpush1.bf16.msra.mxu0 %v2560
    %2582 = vmatprep.subr.bf16.mxu0 0
    %2583 = vmatpush1.bf16.msra.mxu0 %v2561
    %2584 = vmatprep.subr.bf16.mxu0 0
    %2585 = vmatpush1.bf16.msra.mxu0 %v2562
    %2586 = vmatprep.subr.bf16.mxu0 0
    %2587 = vmatpush1.bf16.msra.mxu0 %v2563
    %2588 = vmatprep.subr.bf16.mxu0 0
    %2589 = vmatpush1.bf16.msra.mxu0 0
    %2590 = vmatprep.subr.bf16.mxu0 0
    %2591 = vmatpush1.bf16.msra.mxu0 0
    %2592 = vmatprep.subr.bf16.mxu0 0
    %2593 = vmatpush1.bf16.msra.mxu0 0
    %2594 = vmatprep.subr.bf16.mxu0 0
    %2595 = vmatpush1.bf16.msra.mxu0 0
    %2596 = vmatprep.subr.bf16.mxu0 0
    %2597 = vmatpush1.bf16.msra.mxu0 0
    %2598 = vmatprep.subr.bf16.mxu0 0
    %2599 = vmatpush1.bf16.msra.mxu0 0
    %2600 = vmatprep.subr.bf16.mxu0 0
    %2601 = vmatpush1.bf16.msra.mxu0 0
    %2602 = vmatprep.subr.bf16.mxu0 0
    %2603 = vmatpush1.bf16.msra.mxu0 0
    %2604 = vmatprep.mubr.bf16.mxu0 0
    %2605 = vmatmul.mubr.bf16.gmra.mrb[0].mxu0 %v2507
    %v2606 = vpop.f32.mrb[0].mxu0
    %v2607 = vadd.f32 0.0, %v2606
    %v2608 = vpop.f32.mrb[0].mxu0
    %v2609 = vpop.f32.mrb[0].mxu0
    %v2610 = vpop.f32.mrb[0].mxu0
    %2611 = vdwg.mxu0
    %2612 = vst [vmem:[#allocation14] sm:$0xff] %v2607
    // Predicated region
    $region58: #{tpu_custom_call.1} parent=1 // pred_check
      _
    $region59: #{tpu_custom_call.1} parent=1 // pred_check_branch
      %2614 = sbr.rel (0) target = $region61
    $region60: #{tpu_custom_call.1} parent=1 // pred_region
      %s2616 = ssub.s32 128, 128
      %2617 = vsyncadd [#allocation4], %s2616
      %s2619 = sshll.u32 [#allocation14], 4
      %s2620 = int_to_ptr.vmem [resolvable:$true] %s2619
      %2622 = dma.vmem_to_hbm [thread:$0]  %s2620, 128, %s7, [#allocation4]
    $region61: #{tpu_custom_call.1} parent=1 // pred_fallthru
      _
    // Predicated region
    $region62: #{tpu_custom_call.1} parent=1 // pred_check
      _
    $region63: #{tpu_custom_call.1} parent=1 // pred_check_branch
      %2624 = sbr.rel (0) target = $region65
    $region64: #{tpu_custom_call.1} parent=1 // pred_region
      %2625 = dma.done [#allocation4], 128
    $region65: #{tpu_custom_call.1} parent=1 // pred_fallthru
      _
    %2626 = vsyncpa [#allocation3], 1
    %2627 = vsyncpa [#allocation6], 1
    %2628 = vsyncpa [#allocation9], 1
    %2629 = vsyncpa [#allocation12], 1
    %2630 = vsyncpa [#allocation4], 1

</llo_original>
